<compile_context>
chip_gen: v7x
topology: tpu7x:2x2x1
jax: 0.10.0
libtpu: 0.0.40
codegen_flags: <defaults>
</compile_context>

<pallas_src>
import functools

import jax
import jax.numpy as jnp
from jax.experimental import pallas as pl
from jax.experimental.pallas import tpu as pltpu


def _round_up(x, m):
    return ((x + m - 1) // m) * m


def _cdiv(a, b):
    return -(-a // b)


def qmix_kernel(n_agents, hypernet_embed, embed_dim, matmul_dtype,
                aq_ref, st_ref,                 # (n_agents, TB), (TB, state_dim)
                wcat_ref, bcat_ref,             # fused first-stage hypernet linears
                w2_ref, b2_ref,                 # fused block-diag second stage (w_1 | w_final)
                wv2_ref, bv2_ref,               # V head second linear (kept on the VPU)
                out_ref):                       # (action_shape, TB)
    f32 = jnp.float32
    H, E, A = hypernet_embed, embed_dim, n_agents

    # ---- fused first stage: [hyper_w_1[0] | hyper_w_final[0] | V[0] | hyper_b_1]
    # States arrive batch-major (TB, S); contract on the shared feature axis
    # (rhs-transposed matmul, same dimension_numbers as flash-attention q@k^T)
    # so the result keeps the batch on the lane (minor) axis: (2H+2E, TB).
    st = st_ref[...].astype(matmul_dtype)
    z = jax.lax.dot_general(wcat_ref[...], st,
                            dimension_numbers=(((1,), (1,)), ((), ())),
                            preferred_element_type=f32) + bcat_ref[...]

    h12 = jnp.maximum(z[0:2 * H, :], 0.0)             # relu'd inputs of both 2nd-stage nets
    hv = jnp.maximum(z[2 * H:2 * H + E, :], 0.0)      # V hidden
    b1 = z[2 * H + E:2 * H + 2 * E, :]                # hyper_b_1 output (no relu)

    # ---- fused block-diagonal second stage -> [ |w1| ; |w_final| ]  (A*E + E, TB)
    wmix = jnp.abs(
        jnp.dot(w2_ref[...], h12.astype(matmul_dtype), preferred_element_type=f32)
        + b2_ref[...])

    # ---- hidden = elu( sum_a aq[a] * w1[a] + b1 )
    # Each agent row of aq is broadcast over E sublanes; batch stays on lanes so
    # the multiplies/adds are full-vreg VPU ops.  (A stride-0 pl.ds broadcast
    # load was considered per the review but skipped: the mixing loop is hidden
    # under the VPU elementwise work, and the row-slice form is lowering-safe.)
    aqv = aq_ref[...].astype(f32)                     # (A, TB)
    acc = b1
    for a in range(A):
        acc = acc + aqv[a:a + 1, :] * wmix[a * E:(a + 1) * E, :]
    hidden = jnp.where(acc > 0, acc, jnp.exp(jnp.minimum(acc, 0.0)) - 1.0)  # overflow-safe ELU

    wf = wmix[A * E:(A + 1) * E, :]                   # (E, TB)

    # ---- single fused sublane reduction: q_tot = sum_e(hidden*wf + wv2*hv) + bv2
    y = jnp.sum(hidden * wf + wv2_ref[...] * hv, axis=0, keepdims=True) + bv2_ref[...]
    out_ref[...] = y.astype(out_ref.dtype)            # lane-dense (1, TB) store


def pack_params(params, *, n_agents, embed_dim, hypernet_embed, matmul_dtype):
    """Host-side one-time repack: fuse the four state-input linears, build the
    block-diagonal second stage, transpose to feature-major, and pre-cast the
    MXU operands to matmul_dtype (biases stay f32, added post-accumulation)."""
    H, E, A = hypernet_embed, embed_dim, n_agents
    f32 = jnp.float32
    # fused first stage: columns [hyper_w_1[0] | hyper_w_final[0] | V[0] | hyper_b_1]
    wcat = jnp.concatenate([params["w1h"], params["wf1"], params["wv1"], params["wb1"]], axis=1)
    bcat = jnp.concatenate([params["b1h"], params["bf1"], params["bv1"], params["bb1"]], axis=1)
    # fused block-diagonal second stage acting on relu(z[0:2H]):
    #   [ w1o  0   ]   rows 0:H   -> hyper_w_1[2]
    #   [ 0    wf2 ]   rows H:2H  -> hyper_w_final[2]
    w2 = jnp.zeros((2 * H, A * E + E), f32)
    w2 = w2.at[0:H, 0:A * E].set(params["w1o"].astype(f32))
    w2 = w2.at[H:2 * H, A * E:].set(params["wf2"].astype(f32))
    b2 = jnp.concatenate([params["b1o"], params["bf2"]], axis=1)
    return (wcat.T.astype(matmul_dtype),        # (2H+2E, S)   MXU lhs, pre-cast once
            bcat.T.astype(f32),                 # (2H+2E, 1)
            w2.T.astype(matmul_dtype),          # (A*E+E, 2H)  MXU lhs, pre-cast once
            b2.T.astype(f32),                   # (A*E+E, 1)
            params["wv2"].astype(f32),          # (E, 1)       VPU
            params["bv2"].T.astype(f32))        # (1, 1)


def qmix_forward(agent_qs, states, params, *, n_agents, embed_dim, action_shape,
                 hypernet_embed, tile_b=2048, matmul_dtype=jnp.bfloat16):
    """agent_qs: (bs, n_agents, action_shape), states: (bs, state_dim)."""
    # TODO(synk): the torch forward's view(-1, 1, n_agents) / bmm is only
    # shape-consistent when action_shape == 1, so only that path is implemented.
    assert action_shape == 1, "QMix forward requires action_shape == 1"

    bs = agent_qs.shape[0]
    st = states.reshape(-1, states.shape[-1]).astype(jnp.float32)   # (B, S), natural layout
    aq = agent_qs.reshape(-1, n_agents).astype(jnp.float32)         # (B, A)
    assert aq.shape[0] == st.shape[0]
    batch, state_dim = st.shape

    # Batch lives on the lane (minor) axis inside the kernel -> 128-granular tiles.
    b128 = _round_up(batch, 128)
    tile_b = max(128, _round_up(min(int(tile_b), b128), 128))
    if b128 >= 256:                               # keep >= 2 grid steps (v7x megacore)
        tile_b = min(tile_b, _round_up(_cdiv(b128, 2), 128))
    num_tiles = _cdiv(b128, tile_b)               # last tile may be partial (Pallas masks it)

    if b128 != batch:                             # pad only when batch isn't 128-aligned
        st = jnp.pad(st, ((0, b128 - batch), (0, 0)))
        aq = jnp.pad(aq, ((0, b128 - batch), (0, 0)))
    # States stay in natural (B, S) layout (no host transpose/pad HBM pass for the
    # wide input); only the tiny (B, A) agent-q tensor is transposed so per-agent
    # rows sit on sublanes inside the kernel.
    aq_t = aq.T                                   # (A, b128)

    weights = pack_params(params, n_agents=n_agents, embed_dim=embed_dim,
                          hypernet_embed=hypernet_embed, matmul_dtype=matmul_dtype)

    kern = functools.partial(qmix_kernel, n_agents, hypernet_embed, embed_dim, matmul_dtype)

    in_specs = ([pl.BlockSpec((n_agents, tile_b), lambda i: (0, i)),
                 pl.BlockSpec((tile_b, state_dim), lambda i: (i, 0))]
                + [pl.BlockSpec(w.shape, lambda i: (0, 0)) for w in weights])

    OUT1 = 2 * hypernet_embed + 2 * embed_dim
    OUT2 = (n_agents + 1) * embed_dim
    weight_bytes = int(sum(int(w.size) * w.dtype.itemsize for w in weights))
    io_bytes_per_b = 4 * (state_dim + n_agents + action_shape)
    cost = pl.CostEstimate(
        flops=int(b128) * (2 * state_dim * OUT1 + 4 * hypernet_embed * OUT2
                           + 2 * n_agents * embed_dim + 6 * embed_dim),
        transcendentals=int(b128) * embed_dim,
        bytes_accessed=int(b128) * io_bytes_per_b + weight_bytes)

    # Scoped VMEM: ~4.3 KB of f32 intermediates per batch element; scale the limit
    # with the tile so big tiles (v5e/v6e, 128 MiB physical VMEM) are accepted while
    # the default 2048-wide tile stays within the normal 32 MiB scoped budget (v7x-safe).
    live_rows = OUT1 + 2 * hypernet_embed + OUT2 + 6 * embed_dim
    tile_bytes = 4 * tile_b * live_rows + 2 * tile_b * io_bytes_per_b + 2 * weight_bytes
    vmem_limit = int(min(128 * 1024 * 1024, max(32 * 1024 * 1024, 2 * tile_bytes)))

    out = pl.pallas_call(
        kern,
        grid=(num_tiles,),
        out_shape=jax.ShapeDtypeStruct((action_shape, b128), jnp.float32),
        in_specs=in_specs,
        out_specs=pl.BlockSpec((action_shape, tile_b), lambda i: (0, i)),
        compiler_params=pltpu.CompilerParams(
            dimension_semantics=("parallel",),
            vmem_limit_bytes=vmem_limit),
        cost_estimate=cost,
    )(aq_t, st, *weights)

    return out[:, :batch].T.reshape(bs, action_shape)


def make_params(key, state_dim, n_agents, action_shape, embed_dim, hypernet_embed):
    """Deterministic PyTorch-Linear-style init; weights stored as (in, out)."""
    def linear(k, fan_in, fan_out):
        k1, k2 = jax.random.split(k)
        bound = 1.0 / jnp.sqrt(fan_in)
        w = jax.random.uniform(k1, (fan_in, fan_out), jnp.float32, -bound, bound)
        b = jax.random.uniform(k2, (1, fan_out), jnp.float32, -bound, bound)
        return w, b

    keys = jax.random.split(key, 7)
    p = {}
    p["w1h"], p["b1h"] = linear(keys[0], state_dim, hypernet_embed)
    p["w1o"], p["b1o"] = linear(keys[1], hypernet_embed, n_agents * embed_dim)
    p["wb1"], p["bb1"] = linear(keys[2], state_dim, embed_dim)
    p["wf1"], p["bf1"] = linear(keys[3], state_dim, hypernet_embed)
    p["wf2"], p["bf2"] = linear(keys[4], hypernet_embed, embed_dim * action_shape)
    p["wv1"], p["bv1"] = linear(keys[5], state_dim, embed_dim)
    p["wv2"], p["bv2"] = linear(keys[6], embed_dim, action_shape)
    return p


def qmix_reference(agent_qs, states, params, *, n_agents, embed_dim, action_shape):
    """Pure-JAX replica of the torch forward, for verification."""
    bs = agent_qs.shape[0]
    st = states.reshape(-1, states.shape[-1])
    aq = agent_qs.reshape(-1, 1, n_agents)
    relu = lambda x: jnp.maximum(x, 0.0)
    w1 = jnp.abs(relu(st @ params["w1h"] + params["b1h"]) @ params["w1o"] + params["b1o"])
    w1 = w1.reshape(-1, n_agents, embed_dim)
    b1 = (st @ params["wb1"] + params["bb1"]).reshape(-1, 1, embed_dim)
    hidden = jax.nn.elu(jnp.einsum("bij,bjk->bik", aq, w1) + b1)
    wf = jnp.abs(relu(st @ params["wf1"] + params["bf1"]) @ params["wf2"] + params["bf2"])
    wf = wf.reshape(-1, embed_dim, action_shape)
    v = (relu(st @ params["wv1"] + params["bv1"]) @ params["wv2"] + params["bv2"])
    v = v.reshape(-1, 1, action_shape)
    y = jnp.einsum("bij,bjk->bik", hidden, wf) + v
    return y.reshape(bs, action_shape)


if __name__ == "__main__":
    state_dim, n_agents, action_shape = 32, 4, 1
    embed_dim, hypernet_embed = 64, 64

    key = jax.random.PRNGKey(0)
    k_p = jax.random.fold_in(key, 0)
    params = make_params(k_p, state_dim, n_agents, action_shape, embed_dim, hypernet_embed)

    def run_and_check(batch, tile_b, matmul_dtype, atol, rtol):
        kq, ks = jax.random.split(jax.random.fold_in(key, batch))
        agent_qs = jax.random.normal(kq, (batch, n_agents, action_shape), jnp.float32)
        states = jax.random.normal(ks, (batch, state_dim), jnp.float32)
        q_tot = qmix_forward(agent_qs, states, params,
                             n_agents=n_agents, embed_dim=embed_dim,
                             action_shape=action_shape, hypernet_embed=hypernet_embed,
                             tile_b=tile_b, matmul_dtype=matmul_dtype)
        q_tot = jax.block_until_ready(q_tot)
        ref = qmix_reference(agent_qs, states, params,
                             n_agents=n_agents, embed_dim=embed_dim,
                             action_shape=action_shape)
        assert q_tot.shape == (batch, action_shape)
        err = float(jnp.max(jnp.abs(q_tot - ref)))
        assert jnp.allclose(q_tot, ref, atol=atol, rtol=rtol), \
            f"mismatch vs reference (batch={batch}, dtype={matmul_dtype}, max_err={err})"

    # f32 MXU path: tight tolerance (single tile, and a partial-last-tile grid).
    run_and_check(batch=8, tile_b=512, matmul_dtype=jnp.float32, atol=1e-4, rtol=1e-4)
    run_and_check(batch=300, tile_b=256, matmul_dtype=jnp.float32, atol=1e-4, rtol=1e-4)
    # bf16 MXU operands (the fast default on v5e/v6e/v7x): loosened tolerance,
    # since hyper_b_1's unrectified output feeds ELU directly.
    run_and_check(batch=200, tile_b=2048, matmul_dtype=jnp.bfloat16, atol=2e-1, rtol=5e-2)
    print("KERNEL_OK")
</pallas_src>

<mosaic_0001>
module attributes {stable_mosaic.version = 11 : i64} {
  func.func @qmix_kernel(%arg0: i32, %arg1: memref<4x128xf32, #tpu.memory_space<vmem>>, %arg2: memref<128x32xf32, #tpu.memory_space<vmem>>, %arg3: memref<256x32xf32, #tpu.memory_space<vmem>>, %arg4: memref<256x1xf32, #tpu.memory_space<vmem>>, %arg5: memref<320x128xf32, #tpu.memory_space<vmem>>, %arg6: memref<320x1xf32, #tpu.memory_space<vmem>>, %arg7: memref<64x1xf32, #tpu.memory_space<vmem>>, %arg8: memref<1x1xf32, #tpu.memory_space<vmem>>, %arg9: memref<1x128xf32, #tpu.memory_space<vmem>>) attributes {dimension_semantics = [#tpu.dimension_semantics<parallel>], iteration_bounds = array<i64: 1>, scalar_prefetch = 0 : i64, scratch_operands = 0 : i64, tpu.core_type = #tpu.core_type<tc>, window_params = [{transform_indices = @transform_0, window_bounds = array<i64: 4, 128>}, {transform_indices = @transform_1, window_bounds = array<i64: 128, 32>}, {pipeline_mode = #tpu.pipeline_mode<synchronous>, transform_indices = @transform_2, window_bounds = array<i64: 256, 32>}, {pipeline_mode = #tpu.pipeline_mode<synchronous>, transform_indices = @transform_3, window_bounds = array<i64: 256, 1>}, {pipeline_mode = #tpu.pipeline_mode<synchronous>, transform_indices = @transform_4, window_bounds = array<i64: 320, 128>}, {pipeline_mode = #tpu.pipeline_mode<synchronous>, transform_indices = @transform_5, window_bounds = array<i64: 320, 1>}, {pipeline_mode = #tpu.pipeline_mode<synchronous>, transform_indices = @transform_6, window_bounds = array<i64: 64, 1>}, {pipeline_mode = #tpu.pipeline_mode<synchronous>, transform_indices = @transform_7, window_bounds = array<i64: 1, 1>}, {transform_indices = @transform_8, window_bounds = array<i64: 1, 128>}]} {
    %c0 = arith.constant 0 : index
    %c0_0 = arith.constant 0 : index
    %0 = vector.load %arg2[%c0, %c0_0] : memref<128x32xf32, #tpu.memory_space<vmem>>, vector<128x32xf32>
    %c0_1 = arith.constant 0 : index
    %c0_2 = arith.constant 0 : index
    %1 = vector.load %arg3[%c0_1, %c0_2] : memref<256x32xf32, #tpu.memory_space<vmem>>, vector<256x32xf32>
    %cst = arith.constant dense<0.000000e+00> : vector<256x128xf32>
    %2 = tpu.matmul %1, %0, %cst {dimension_numbers = #tpu.dot_dimension_numbers<[1], [1], [0], [0], [0, 0, 1, 0], [], []>} : vector<256x32xf32>, vector<128x32xf32>, vector<256x128xf32> -> vector<256x128xf32>
    %c0_3 = arith.constant 0 : index
    %c0_4 = arith.constant 0 : index
    %3 = vector.load %arg4[%c0_3, %c0_4] : memref<256x1xf32, #tpu.memory_space<vmem>>, vector<256x1xf32>
    %4 = vector.broadcast %3 : vector<256x1xf32> to vector<256x128xf32>
    %5 = arith.addf %2, %4 : vector<256x128xf32>
    %6 = vector.extract_strided_slice %5 {offsets = [0, 0], sizes = [128, 128], strides = [1, 1]} : vector<256x128xf32> to vector<128x128xf32>
    %cst_5 = arith.constant 0.000000e+00 : f32
    %7 = vector.broadcast %cst_5 : f32 to vector<128x128xf32>
    %8 = arith.maximumf %6, %7 : vector<128x128xf32>
    %9 = vector.extract_strided_slice %5 {offsets = [128, 0], sizes = [64, 128], strides = [1, 1]} : vector<256x128xf32> to vector<64x128xf32>
    %cst_6 = arith.constant 0.000000e+00 : f32
    %10 = vector.broadcast %cst_6 : f32 to vector<64x128xf32>
    %11 = arith.maximumf %9, %10 : vector<64x128xf32>
    %12 = vector.extract_strided_slice %5 {offsets = [192, 0], sizes = [64, 128], strides = [1, 1]} : vector<256x128xf32> to vector<64x128xf32>
    %c0_7 = arith.constant 0 : index
    %c0_8 = arith.constant 0 : index
    %13 = vector.load %arg5[%c0_7, %c0_8] : memref<320x128xf32, #tpu.memory_space<vmem>>, vector<320x128xf32>
    %cst_9 = arith.constant dense<0.000000e+00> : vector<320x128xf32>
    %14 = tpu.matmul %13, %8, %cst_9 {dimension_numbers = #tpu.dot_dimension_numbers<[1], [0], [0], [1], [0, 0, 1, 1], [], []>} : vector<320x128xf32>, vector<128x128xf32>, vector<320x128xf32> -> vector<320x128xf32>
    %c0_10 = arith.constant 0 : index
    %c0_11 = arith.constant 0 : index
    %15 = vector.load %arg6[%c0_10, %c0_11] : memref<320x1xf32, #tpu.memory_space<vmem>>, vector<320x1xf32>
    %16 = vector.broadcast %15 : vector<320x1xf32> to vector<320x128xf32>
    %17 = arith.addf %14, %16 : vector<320x128xf32>
    %18 = math.absf %17 : vector<320x128xf32>
    %c0_12 = arith.constant 0 : index
    %c0_13 = arith.constant 0 : index
    %19 = vector.load %arg1[%c0_12, %c0_13] : memref<4x128xf32, #tpu.memory_space<vmem>>, vector<4x128xf32>
    %20 = vector.extract_strided_slice %19 {offsets = [0, 0], sizes = [1, 128], strides = [1, 1]} : vector<4x128xf32> to vector<1x128xf32>
    %21 = vector.extract_strided_slice %18 {offsets = [0, 0], sizes = [64, 128], strides = [1, 1]} : vector<320x128xf32> to vector<64x128xf32>
    %22 = vector.broadcast %20 : vector<1x128xf32> to vector<64x128xf32>
    %23 = arith.mulf %22, %21 : vector<64x128xf32>
    %24 = arith.addf %12, %23 : vector<64x128xf32>
    %25 = vector.extract_strided_slice %19 {offsets = [1, 0], sizes = [1, 128], strides = [1, 1]} : vector<4x128xf32> to vector<1x128xf32>
    %26 = vector.extract_strided_slice %18 {offsets = [64, 0], sizes = [64, 128], strides = [1, 1]} : vector<320x128xf32> to vector<64x128xf32>
    %27 = vector.broadcast %25 : vector<1x128xf32> to vector<64x128xf32>
    %28 = arith.mulf %27, %26 : vector<64x128xf32>
    %29 = arith.addf %24, %28 : vector<64x128xf32>
    %30 = vector.extract_strided_slice %19 {offsets = [2, 0], sizes = [1, 128], strides = [1, 1]} : vector<4x128xf32> to vector<1x128xf32>
    %31 = vector.extract_strided_slice %18 {offsets = [128, 0], sizes = [64, 128], strides = [1, 1]} : vector<320x128xf32> to vector<64x128xf32>
    %32 = vector.broadcast %30 : vector<1x128xf32> to vector<64x128xf32>
    %33 = arith.mulf %32, %31 : vector<64x128xf32>
    %34 = arith.addf %29, %33 : vector<64x128xf32>
    %35 = vector.extract_strided_slice %19 {offsets = [3, 0], sizes = [1, 128], strides = [1, 1]} : vector<4x128xf32> to vector<1x128xf32>
    %36 = vector.extract_strided_slice %18 {offsets = [192, 0], sizes = [64, 128], strides = [1, 1]} : vector<320x128xf32> to vector<64x128xf32>
    %37 = vector.broadcast %35 : vector<1x128xf32> to vector<64x128xf32>
    %38 = arith.mulf %37, %36 : vector<64x128xf32>
    %39 = arith.addf %34, %38 : vector<64x128xf32>
    %cst_14 = arith.constant 0.000000e+00 : f32
    %40 = vector.broadcast %cst_14 : f32 to vector<64x128xf32>
    %41 = arith.cmpf ogt, %39, %40 : vector<64x128xf32>
    %cst_15 = arith.constant 0.000000e+00 : f32
    %42 = vector.broadcast %cst_15 : f32 to vector<64x128xf32>
    %43 = arith.minimumf %39, %42 : vector<64x128xf32>
    %44 = math.exp %43 : vector<64x128xf32>
    %cst_16 = arith.constant 1.000000e+00 : f32
    %45 = vector.broadcast %cst_16 : f32 to vector<64x128xf32>
    %46 = arith.subf %44, %45 : vector<64x128xf32>
    %47 = arith.select %41, %39, %46 : vector<64x128xi1>, vector<64x128xf32>
    %48 = vector.extract_strided_slice %18 {offsets = [256, 0], sizes = [64, 128], strides = [1, 1]} : vector<320x128xf32> to vector<64x128xf32>
    %49 = arith.mulf %47, %48 : vector<64x128xf32>
    %c0_17 = arith.constant 0 : index
    %c0_18 = arith.constant 0 : index
    %50 = vector.load %arg7[%c0_17, %c0_18] : memref<64x1xf32, #tpu.memory_space<vmem>>, vector<64x1xf32>
    %51 = vector.broadcast %50 : vector<64x1xf32> to vector<64x128xf32>
    %52 = arith.mulf %51, %11 : vector<64x128xf32>
    %53 = arith.addf %49, %52 : vector<64x128xf32>
    %cst_19 = arith.constant dense<0.000000e+00> : vector<128xf32>
    %54 = vector.multi_reduction <add>, %53, %cst_19 [0] : vector<64x128xf32> to vector<128xf32>
    %55 = vector.shape_cast %54 : vector<128xf32> to vector<1x128xf32>
    %c0_20 = arith.constant 0 : index
    %c0_21 = arith.constant 0 : index
    %56 = vector.load %arg8[%c0_20, %c0_21] : memref<1x1xf32, #tpu.memory_space<vmem>>, vector<1x1xf32>
    %57 = vector.broadcast %56 : vector<1x1xf32> to vector<1x128xf32>
    %58 = arith.addf %55, %57 : vector<1x128xf32>
    %c0_22 = arith.constant 0 : index
    %c0_23 = arith.constant 0 : index
    %59 = vector.load %arg9[%c0_22, %c0_23] : memref<1x128xf32, #tpu.memory_space<vmem>>, vector<1x128xf32>
    tpu.vector_store %arg9[%c0_22, %c0_23], %58 {strides = array<i32>} : memref<1x128xf32, #tpu.memory_space<vmem>>, vector<1x128xf32>,
    return
  }
  func.func @transform_0(%arg0: i32) -> (i32, i32) {
    %c0_i32 = arith.constant 0 : i32
    %c0_i32_0 = arith.constant 0 : i32
    return %c0_i32, %arg0 : i32, i32
  }
  func.func @transform_1(%arg0: i32) -> (i32, i32) {
    %c0_i32 = arith.constant 0 : i32
    %c0_i32_0 = arith.constant 0 : i32
    return %arg0, %c0_i32 : i32, i32
  }
  func.func @transform_2(%arg0: i32) -> (i32, i32) {
    %c0_i32 = arith.constant 0 : i32
    %c0_i32_0 = arith.constant 0 : i32
    %c0_i32_1 = arith.constant 0 : i32
    return %c0_i32, %c0_i32_0 : i32, i32
  }
  func.func @transform_3(%arg0: i32) -> (i32, i32) {
    %c0_i32 = arith.constant 0 : i32
    %c0_i32_0 = arith.constant 0 : i32
    %c0_i32_1 = arith.constant 0 : i32
    return %c0_i32, %c0_i32_0 : i32, i32
  }
  func.func @transform_4(%arg0: i32) -> (i32, i32) {
    %c0_i32 = arith.constant 0 : i32
    %c0_i32_0 = arith.constant 0 : i32
    %c0_i32_1 = arith.constant 0 : i32
    return %c0_i32, %c0_i32_0 : i32, i32
  }
  func.func @transform_5(%arg0: i32) -> (i32, i32) {
    %c0_i32 = arith.constant 0 : i32
    %c0_i32_0 = arith.constant 0 : i32
    %c0_i32_1 = arith.constant 0 : i32
    return %c0_i32, %c0_i32_0 : i32, i32
  }
  func.func @transform_6(%arg0: i32) -> (i32, i32) {
    %c0_i32 = arith.constant 0 : i32
    %c0_i32_0 = arith.constant 0 : i32
    %c0_i32_1 = arith.constant 0 : i32
    return %c0_i32, %c0_i32_0 : i32, i32
  }
  func.func @transform_7(%arg0: i32) -> (i32, i32) {
    %c0_i32 = arith.constant 0 : i32
    %c0_i32_0 = arith.constant 0 : i32
    %c0_i32_1 = arith.constant 0 : i32
    return %c0_i32, %c0_i32_0 : i32, i32
  }
  func.func @transform_8(%arg0: i32) -> (i32, i32) {
    %c0_i32 = arith.constant 0 : i32
    %c0_i32_0 = arith.constant 0 : i32
    return %c0_i32, %arg0 : i32, i32
  }
}

</mosaic_0001>

<llo_original>
// kernel: tpu_custom_call.1
$region0: #{tpu_custom_call.1}
  #allocation0 [shape = 'u32[]', space=smem, size = 0x4, offset = 0x4, fixed_abs, tag = 'smem constant byte address 0x4 - core index']
  #allocation1 [shape = 'u32[144,128]{1,0:T(1,128)}', space=vmem, size = 0x12000, scoped, tag = 'internal scratch']
  #allocation2 [shape = 'f32[1,1]{1,0:T(1,128)S(1)}', space=vmem, size = 0x200, scoped, tag = 'scoped memory for tpu_custom_call.1']
  %s0 = inlined_call_operand.vmem [shape: f32[4,128], index: 0, kind: input, shape index: {}]
  %s1 = inlined_call_operand.vmem [shape: f32[128,32], index: 1, kind: input, shape index: {}]
  %s2 = inlined_call_operand.vmem [shape: f32[256,32], index: 2, kind: input, shape index: {}]
  %s3 = inlined_call_operand.vmem [shape: f32[256,1], index: 3, kind: input, shape index: {}]
  %s4 = inlined_call_operand.vmem [shape: f32[320,128], index: 4, kind: input, shape index: {}]
  %s5 = inlined_call_operand.vmem [shape: f32[320,1], index: 5, kind: input, shape index: {}]
  %s6 = inlined_call_operand.vmem [shape: f32[64,1], index: 6, kind: input, shape index: {}]
  %s7 = inlined_call_operand.<no memory space> [shape: f32[1,1], index: 7, kind: input, shape index: {}]
  %s8 = inlined_call_operand.hbm [shape: f32[1,128], index: 8, kind: output, shape index: {}]
  %s9 = sld [smem:[#allocation0]]
  $region42: #{tpu_custom_call.1} parent=0
    _
  %s11 = ssub.s32 1, %s9
  %s12 = scalar_select 0, %s11, %s9
  %v13 = vstv %s7
  %14 = vst [vmem:[#allocation2] sm:$0x1] %v13
  $region1: #{tpu_custom_call.1} parent=0
    #allocation3 [shape = 'u8[512]{0}', space=vmem, size = 0x400, scoped, tag = 'output window, operand 0, single buffered']
    #allocation4 [shape = 's32[1]{0}', space=sflag, size = 0x4, scoped, tag = 'scoped memory for tpu_custom_call.1']
    %15 = vsyncpa [#allocation4], 0
    // Predicated region
    $region2: #{tpu_custom_call.1} parent=1 // pred_check
      _
    $region3: #{tpu_custom_call.1} parent=1 // pred_check_branch
      %17 = sbr.rel (0) target = $region5
    $region4: #{tpu_custom_call.1} parent=1 // pred_region
      _
    $region5: #{tpu_custom_call.1} parent=1 // pred_fallthru
      _
    // Predicated region
    $region6: #{tpu_custom_call.1} parent=1 // pred_check
      _
    $region7: #{tpu_custom_call.1} parent=1 // pred_check_branch
      %19 = sbr.rel (0) target = $region9
    $region8: #{tpu_custom_call.1} parent=1 // pred_region
      _
    $region9: #{tpu_custom_call.1} parent=1 // pred_fallthru
      _
    // Predicated region
    $region10: #{tpu_custom_call.1} parent=1 // pred_check
      _
    $region11: #{tpu_custom_call.1} parent=1 // pred_check_branch
      %21 = sbr.rel (0) target = $region13
    $region12: #{tpu_custom_call.1} parent=1 // pred_region
      _
    $region13: #{tpu_custom_call.1} parent=1 // pred_fallthru
      _
    // Predicated region
    $region14: #{tpu_custom_call.1} parent=1 // pred_check
      _
    $region15: #{tpu_custom_call.1} parent=1 // pred_check_branch
      %23 = sbr.rel (0) target = $region17
    $region16: #{tpu_custom_call.1} parent=1 // pred_region
      _
    $region17: #{tpu_custom_call.1} parent=1 // pred_fallthru
      _
    // Predicated region
    $region18: #{tpu_custom_call.1} parent=1 // pred_check
      _
    $region19: #{tpu_custom_call.1} parent=1 // pred_check_branch
      %25 = sbr.rel (0) target = $region21
    $region20: #{tpu_custom_call.1} parent=1 // pred_region
      _
    $region21: #{tpu_custom_call.1} parent=1 // pred_fallthru
      _
    // Predicated region
    $region22: #{tpu_custom_call.1} parent=1 // pred_check
      _
    $region23: #{tpu_custom_call.1} parent=1 // pred_check_branch
      %27 = sbr.rel (0) target = $region25
    $region24: #{tpu_custom_call.1} parent=1 // pred_region
      _
    $region25: #{tpu_custom_call.1} parent=1 // pred_fallthru
      _
    // Predicated region
    $region26: #{tpu_custom_call.1} parent=1 // pred_check
      _
    $region27: #{tpu_custom_call.1} parent=1 // pred_check_branch
      %29 = sbr.rel (0) target = $region29
    $region28: #{tpu_custom_call.1} parent=1 // pred_region
      _
    $region29: #{tpu_custom_call.1} parent=1 // pred_fallthru
      _
    // Predicated region
    $region30: #{tpu_custom_call.1} parent=1 // pred_check
      _
    $region31: #{tpu_custom_call.1} parent=1 // pred_check_branch
      %31 = sbr.rel (0) target = $region33
    $region32: #{tpu_custom_call.1} parent=1 // pred_region
      _
    $region33: #{tpu_custom_call.1} parent=1 // pred_fallthru
      _
    %v32 = vld [vmem:[%s1] sm:$0xff]
    %v33 = vld [vmem:[%s1 + $0x8] sm:$0xff]
    %v34 = vld [vmem:[%s1 + $0x10] sm:$0xff]
    %v35 = vld [vmem:[%s1 + $0x18] sm:$0xff]
    %v36 = vld [vmem:[%s1 + $0x20] sm:$0xff]
    %v37 = vld [vmem:[%s1 + $0x28] sm:$0xff]
    %v38 = vld [vmem:[%s1 + $0x30] sm:$0xff]
    %v39 = vld [vmem:[%s1 + $0x38] sm:$0xff]
    %v40 = vld [vmem:[%s1 + $0x40] sm:$0xff]
    %v41 = vld [vmem:[%s1 + $0x48] sm:$0xff]
    %v42 = vld [vmem:[%s1 + $0x50] sm:$0xff]
    %v43 = vld [vmem:[%s1 + $0x58] sm:$0xff]
    %v44 = vld [vmem:[%s1 + $0x60] sm:$0xff]
    %v45 = vld [vmem:[%s1 + $0x68] sm:$0xff]
    %v46 = vld [vmem:[%s1 + $0x70] sm:$0xff]
    %v47 = vld [vmem:[%s1 + $0x78] sm:$0xff]
    %v48 = vld [vmem:[%s2] sm:$0xff]
    %v49 = vld [vmem:[%s2 + $0x8] sm:$0xff]
    %v50 = vld [vmem:[%s2 + $0x10] sm:$0xff]
    %v51 = vld [vmem:[%s2 + $0x18] sm:$0xff]
    %v52 = vld [vmem:[%s2 + $0x20] sm:$0xff]
    %v53 = vld [vmem:[%s2 + $0x28] sm:$0xff]
    %v54 = vld [vmem:[%s2 + $0x30] sm:$0xff]
    %v55 = vld [vmem:[%s2 + $0x38] sm:$0xff]
    %v56 = vld [vmem:[%s2 + $0x40] sm:$0xff]
    %v57 = vld [vmem:[%s2 + $0x48] sm:$0xff]
    %v58 = vld [vmem:[%s2 + $0x50] sm:$0xff]
    %v59 = vld [vmem:[%s2 + $0x58] sm:$0xff]
    %v60 = vld [vmem:[%s2 + $0x60] sm:$0xff]
    %v61 = vld [vmem:[%s2 + $0x68] sm:$0xff]
    %v62 = vld [vmem:[%s2 + $0x70] sm:$0xff]
    %v63 = vld [vmem:[%s2 + $0x78] sm:$0xff]
    %v64 = vld [vmem:[%s2 + $0x80] sm:$0xff]
    %v65 = vld [vmem:[%s2 + $0x88] sm:$0xff]
    %v66 = vld [vmem:[%s2 + $0x90] sm:$0xff]
    %v67 = vld [vmem:[%s2 + $0x98] sm:$0xff]
    %v68 = vld [vmem:[%s2 + $0xa0] sm:$0xff]
    %v69 = vld [vmem:[%s2 + $0xa8] sm:$0xff]
    %v70 = vld [vmem:[%s2 + $0xb0] sm:$0xff]
    %v71 = vld [vmem:[%s2 + $0xb8] sm:$0xff]
    %v72 = vld [vmem:[%s2 + $0xc0] sm:$0xff]
    %v73 = vld [vmem:[%s2 + $0xc8] sm:$0xff]
    %v74 = vld [vmem:[%s2 + $0xd0] sm:$0xff]
    %v75 = vld [vmem:[%s2 + $0xd8] sm:$0xff]
    %v76 = vld [vmem:[%s2 + $0xe0] sm:$0xff]
    %v77 = vld [vmem:[%s2 + $0xe8] sm:$0xff]
    %v78 = vld [vmem:[%s2 + $0xf0] sm:$0xff]
    %v79 = vld [vmem:[%s2 + $0xf8] sm:$0xff]
    %v80 = vld [vmem:[%s3] sm:$0xff]
    %v81 = vld [vmem:[%s3 + $0x8] sm:$0xff]
    %v82 = vld [vmem:[%s3 + $0x10] sm:$0xff]
    %v83 = vld [vmem:[%s3 + $0x18] sm:$0xff]
    %v84 = vld [vmem:[%s3 + $0x20] sm:$0xff]
    %v85 = vld [vmem:[%s3 + $0x28] sm:$0xff]
    %v86 = vld [vmem:[%s3 + $0x30] sm:$0xff]
    %v87 = vld [vmem:[%s3 + $0x38] sm:$0xff]
    %v88 = vld [vmem:[%s3 + $0x40] sm:$0xff]
    %v89 = vld [vmem:[%s3 + $0x48] sm:$0xff]
    %v90 = vld [vmem:[%s3 + $0x50] sm:$0xff]
    %v91 = vld [vmem:[%s3 + $0x58] sm:$0xff]
    %v92 = vld [vmem:[%s3 + $0x60] sm:$0xff]
    %v93 = vld [vmem:[%s3 + $0x68] sm:$0xff]
    %v94 = vld [vmem:[%s3 + $0x70] sm:$0xff]
    %v95 = vld [vmem:[%s3 + $0x78] sm:$0xff]
    %v96 = vld [vmem:[%s3 + $0x80] sm:$0xff]
    %v97 = vld [vmem:[%s3 + $0x88] sm:$0xff]
    %v98 = vld [vmem:[%s3 + $0x90] sm:$0xff]
    %v99 = vld [vmem:[%s3 + $0x98] sm:$0xff]
    %v100 = vld [vmem:[%s3 + $0xa0] sm:$0xff]
    %v101 = vld [vmem:[%s3 + $0xa8] sm:$0xff]
    %v102 = vld [vmem:[%s3 + $0xb0] sm:$0xff]
    %v103 = vld [vmem:[%s3 + $0xb8] sm:$0xff]
    %v104 = vld [vmem:[%s3 + $0xc0] sm:$0xff]
    %v105 = vld [vmem:[%s3 + $0xc8] sm:$0xff]
    %v106 = vld [vmem:[%s3 + $0xd0] sm:$0xff]
    %v107 = vld [vmem:[%s3 + $0xd8] sm:$0xff]
    %v108 = vld [vmem:[%s3 + $0xe0] sm:$0xff]
    %v109 = vld [vmem:[%s3 + $0xe8] sm:$0xff]
    %v110 = vld [vmem:[%s3 + $0xf0] sm:$0xff]
    %v111 = vld [vmem:[%s3 + $0xf8] sm:$0xff]
    %113 = vset.pattern.permute.xlu0 0
    %114 = vperm.xlu0 %113, %v80
    %v115 = vpop.permute.xlu0 %114
    %118 = vset.pattern.permute.xlu0 0
    %119 = vperm.xlu0 %118, %v81
    %v120 = vpop.permute.xlu0 %119
    %123 = vset.pattern.permute.xlu0 0
    %124 = vperm.xlu0 %123, %v82
    %v125 = vpop.permute.xlu0 %124
    %128 = vset.pattern.permute.xlu0 0
    %129 = vperm.xlu0 %128, %v83
    %v130 = vpop.permute.xlu0 %129
    %133 = vset.pattern.permute.xlu0 0
    %134 = vperm.xlu0 %133, %v84
    %v135 = vpop.permute.xlu0 %134
    %138 = vset.pattern.permute.xlu0 0
    %139 = vperm.xlu0 %138, %v85
    %v140 = vpop.permute.xlu0 %139
    %143 = vset.pattern.permute.xlu0 0
    %144 = vperm.xlu0 %143, %v86
    %v145 = vpop.permute.xlu0 %144
    %148 = vset.pattern.permute.xlu0 0
    %149 = vperm.xlu0 %148, %v87
    %v150 = vpop.permute.xlu0 %149
    %153 = vset.pattern.permute.xlu0 0
    %154 = vperm.xlu0 %153, %v88
    %v155 = vpop.permute.xlu0 %154
    %158 = vset.pattern.permute.xlu0 0
    %159 = vperm.xlu0 %158, %v89
    %v160 = vpop.permute.xlu0 %159
    %163 = vset.pattern.permute.xlu0 0
    %164 = vperm.xlu0 %163, %v90
    %v165 = vpop.permute.xlu0 %164
    %168 = vset.pattern.permute.xlu0 0
    %169 = vperm.xlu0 %168, %v91
    %v170 = vpop.permute.xlu0 %169
    %173 = vset.pattern.permute.xlu0 0
    %174 = vperm.xlu0 %173, %v92
    %v175 = vpop.permute.xlu0 %174
    %178 = vset.pattern.permute.xlu0 0
    %179 = vperm.xlu0 %178, %v93
    %v180 = vpop.permute.xlu0 %179
    %183 = vset.pattern.permute.xlu0 0
    %184 = vperm.xlu0 %183, %v94
    %v185 = vpop.permute.xlu0 %184
    %188 = vset.pattern.permute.xlu0 0
    %189 = vperm.xlu0 %188, %v95
    %v190 = vpop.permute.xlu0 %189
    %193 = vset.pattern.permute.xlu0 0
    %194 = vperm.xlu0 %193, %v96
    %v195 = vpop.permute.xlu0 %194
    %198 = vset.pattern.permute.xlu0 0
    %199 = vperm.xlu0 %198, %v97
    %v200 = vpop.permute.xlu0 %199
    %203 = vset.pattern.permute.xlu0 0
    %204 = vperm.xlu0 %203, %v98
    %v205 = vpop.permute.xlu0 %204
    %208 = vset.pattern.permute.xlu0 0
    %209 = vperm.xlu0 %208, %v99
    %v210 = vpop.permute.xlu0 %209
    %213 = vset.pattern.permute.xlu0 0
    %214 = vperm.xlu0 %213, %v100
    %v215 = vpop.permute.xlu0 %214
    %218 = vset.pattern.permute.xlu0 0
    %219 = vperm.xlu0 %218, %v101
    %v220 = vpop.permute.xlu0 %219
    %223 = vset.pattern.permute.xlu0 0
    %224 = vperm.xlu0 %223, %v102
    %v225 = vpop.permute.xlu0 %224
    %228 = vset.pattern.permute.xlu0 0
    %229 = vperm.xlu0 %228, %v103
    %v230 = vpop.permute.xlu0 %229
    %233 = vset.pattern.permute.xlu0 0
    %234 = vperm.xlu0 %233, %v104
    %v235 = vpop.permute.xlu0 %234
    %238 = vset.pattern.permute.xlu0 0
    %239 = vperm.xlu0 %238, %v105
    %v240 = vpop.permute.xlu0 %239
    %243 = vset.pattern.permute.xlu0 0
    %244 = vperm.xlu0 %243, %v106
    %v245 = vpop.permute.xlu0 %244
    %248 = vset.pattern.permute.xlu0 0
    %249 = vperm.xlu0 %248, %v107
    %v250 = vpop.permute.xlu0 %249
    %253 = vset.pattern.permute.xlu0 0
    %254 = vperm.xlu0 %253, %v108
    %v255 = vpop.permute.xlu0 %254
    %258 = vset.pattern.permute.xlu0 0
    %259 = vperm.xlu0 %258, %v109
    %v260 = vpop.permute.xlu0 %259
    %263 = vset.pattern.permute.xlu0 0
    %264 = vperm.xlu0 %263, %v110
    %v265 = vpop.permute.xlu0 %264
    %268 = vset.pattern.permute.xlu0 0
    %269 = vperm.xlu0 %268, %v111
    %v270 = vpop.permute.xlu0 %269
    %vm272 = vcmask 261120
    %v274 = vsel %vm272, %v48, 0
    %v277 = vsel %vm272, %v49, 0
    %v280 = vsel %vm272, %v50, 0
    %v283 = vsel %vm272, %v51, 0
    %v286 = vsel %vm272, %v52, 0
    %v289 = vsel %vm272, %v53, 0
    %v292 = vsel %vm272, %v54, 0
    %v295 = vsel %vm272, %v55, 0
    %v298 = vsel %vm272, %v56, 0
    %v301 = vsel %vm272, %v57, 0
    %v304 = vsel %vm272, %v58, 0
    %v307 = vsel %vm272, %v59, 0
    %v310 = vsel %vm272, %v60, 0
    %v313 = vsel %vm272, %v61, 0
    %v316 = vsel %vm272, %v62, 0
    %v319 = vsel %vm272, %v63, 0
    %v322 = vsel %vm272, %v64, 0
    %v325 = vsel %vm272, %v65, 0
    %v328 = vsel %vm272, %v66, 0
    %v331 = vsel %vm272, %v67, 0
    %v334 = vsel %vm272, %v68, 0
    %v337 = vsel %vm272, %v69, 0
    %v340 = vsel %vm272, %v70, 0
    %v343 = vsel %vm272, %v71, 0
    %v346 = vsel %vm272, %v72, 0
    %v349 = vsel %vm272, %v73, 0
    %v352 = vsel %vm272, %v74, 0
    %v355 = vsel %vm272, %v75, 0
    %v358 = vsel %vm272, %v76, 0
    %v361 = vsel %vm272, %v77, 0
    %v364 = vsel %vm272, %v78, 0
    %v367 = vsel %vm272, %v79, 0
    %v370 = vsel %vm272, %v32, 0
    %v373 = vsel %vm272, %v33, 0
    %v376 = vsel %vm272, %v34, 0
    %v379 = vsel %vm272, %v35, 0
    %v382 = vsel %vm272, %v36, 0
    %v385 = vsel %vm272, %v37, 0
    %v388 = vsel %vm272, %v38, 0
    %v391 = vsel %vm272, %v39, 0
    %v394 = vsel %vm272, %v40, 0
    %v397 = vsel %vm272, %v41, 0
    %v400 = vsel %vm272, %v42, 0
    %v403 = vsel %vm272, %v43, 0
    %v406 = vsel %vm272, %v44, 0
    %v409 = vsel %vm272, %v45, 0
    %v412 = vsel %vm272, %v46, 0
    %v415 = vsel %vm272, %v47, 0
    %417 = vmatprep.subr.mxu0 0.0
    %418 = vmatpush1.xpose.msra.mxu0 %v370
    %419 = vmatprep.subr.mxu0 0.0
    %420 = vmatpush1.xpose.msra.mxu0 %v373
    %421 = vmatprep.subr.mxu0 0.0
    %422 = vmatpush1.xpose.msra.mxu0 %v376
    %423 = vmatprep.subr.mxu0 0.0
    %424 = vmatpush1.xpose.msra.mxu0 %v379
    %425 = vmatprep.subr.mxu0 0.0
    %426 = vmatpush1.xpose.msra.mxu0 %v382
    %427 = vmatprep.subr.mxu0 0.0
    %428 = vmatpush1.xpose.msra.mxu0 %v385
    %429 = vmatprep.subr.mxu0 0.0
    %430 = vmatpush1.xpose.msra.mxu0 %v388
    %431 = vmatprep.subr.mxu0 0.0
    %432 = vmatpush1.xpose.msra.mxu0 %v391
    %433 = vmatprep.subr.mxu0 0.0
    %434 = vmatpush1.xpose.msra.mxu0 %v394
    %435 = vmatprep.subr.mxu0 0.0
    %436 = vmatpush1.xpose.msra.mxu0 %v397
    %437 = vmatprep.subr.mxu0 0.0
    %438 = vmatpush1.xpose.msra.mxu0 %v400
    %439 = vmatprep.subr.mxu0 0.0
    %440 = vmatpush1.xpose.msra.mxu0 %v403
    %441 = vmatprep.subr.mxu0 0.0
    %442 = vmatpush1.xpose.msra.mxu0 %v406
    %443 = vmatprep.subr.mxu0 0.0
    %444 = vmatpush1.xpose.msra.mxu0 %v409
    %445 = vmatprep.subr.mxu0 0.0
    %446 = vmatpush1.xpose.msra.mxu0 %v412
    %447 = vmatprep.subr.mxu0 0.0
    %448 = vmatpush1.xpose.msra.mxu0 %v415
    %449 = vmatprep.subr.mxu0 0.0
    %450 = vmatpush1.xpose.msra.mxu0 0.0
    %451 = vmatprep.subr.mxu0 0.0
    %452 = vmatpush1.xpose.msra.mxu0 0.0
    %453 = vmatprep.subr.mxu0 0.0
    %454 = vmatpush1.xpose.msra.mxu0 0.0
    %455 = vmatprep.subr.mxu0 0.0
    %456 = vmatpush1.xpose.msra.mxu0 0.0
    %457 = vmatprep.subr.mxu0 0.0
    %458 = vmatpush1.xpose.msra.mxu0 0.0
    %459 = vmatprep.subr.mxu0 0.0
    %460 = vmatpush1.xpose.msra.mxu0 0.0
    %461 = vmatprep.subr.mxu0 0.0
    %462 = vmatpush1.xpose.msra.mxu0 0.0
    %463 = vmatprep.subr.mxu0 0.0
    %464 = vmatpush1.xpose.msra.mxu0 0.0
    %465 = vmatprep.subr.mxu0 0.0
    %466 = vmatpush1.xpose.msra.mxu0 0.0
    %467 = vmatprep.subr.mxu0 0.0
    %468 = vmatpush1.xpose.msra.mxu0 0.0
    %469 = vmatprep.subr.mxu0 0.0
    %470 = vmatpush1.xpose.msra.mxu0 0.0
    %471 = vmatprep.subr.mxu0 0.0
    %472 = vmatpush1.xpose.msra.mxu0 0.0
    %473 = vmatprep.subr.mxu0 0.0
    %474 = vmatpush1.xpose.msra.mxu0 0.0
    %475 = vmatprep.subr.mxu0 0.0
    %476 = vmatpush1.xpose.msra.mxu0 0.0
    %477 = vmatprep.subr.mxu0 0.0
    %478 = vmatpush1.xpose.msra.mxu0 0.0
    %479 = vmatprep.subr.mxu0 0.0
    %480 = vmatpush1.xpose.msra.mxu0 0.0
    %481 = vmatprep.mubr.f32.mxu0 0.0
    %482 = vmatmul.mubr.f32.gmra.mrb[0].mxu0 %v274
    %v483 = vpop.f32.mrb[0].mxu0
    %v484 = vadd.f32 %v115, %v483
    %v485 = vpop.f32.mrb[0].mxu0
    %486 = vmatprep.mubr.f32.mxu0 0.0
    %487 = vmatmul.mubr.f32.gmra.mrb[0].mxu0 %v277
    %v488 = vpop.f32.mrb[0].mxu0
    %v489 = vadd.f32 %v120, %v488
    %v490 = vpop.f32.mrb[0].mxu0
    %491 = vmatprep.mubr.f32.mxu0 0.0
    %492 = vmatmul.mubr.f32.gmra.mrb[0].mxu0 %v280
    %v493 = vpop.f32.mrb[0].mxu0
    %v494 = vadd.f32 %v125, %v493
    %v495 = vpop.f32.mrb[0].mxu0
    %496 = vmatprep.mubr.f32.mxu0 0.0
    %497 = vmatmul.mubr.f32.gmra.mrb[0].mxu0 %v283
    %v498 = vpop.f32.mrb[0].mxu0
    %v499 = vadd.f32 %v130, %v498
    %v500 = vpop.f32.mrb[0].mxu0
    %501 = vmatprep.mubr.f32.mxu0 0.0
    %502 = vmatmul.mubr.f32.gmra.mrb[0].mxu0 %v286
    %v503 = vpop.f32.mrb[0].mxu0
    %v504 = vadd.f32 %v135, %v503
    %v505 = vpop.f32.mrb[0].mxu0
    %506 = vmatprep.mubr.f32.mxu0 0.0
    %507 = vmatmul.mubr.f32.gmra.mrb[0].mxu0 %v289
    %v508 = vpop.f32.mrb[0].mxu0
    %v509 = vadd.f32 %v140, %v508
    %v510 = vpop.f32.mrb[0].mxu0
    %511 = vmatprep.mubr.f32.mxu0 0.0
    %512 = vmatmul.mubr.f32.gmra.mrb[0].mxu0 %v292
    %v513 = vpop.f32.mrb[0].mxu0
    %v514 = vadd.f32 %v145, %v513
    %v515 = vpop.f32.mrb[0].mxu0
    %516 = vmatprep.mubr.f32.mxu0 0.0
    %517 = vmatmul.mubr.f32.gmra.mrb[0].mxu0 %v295
    %v518 = vpop.f32.mrb[0].mxu0
    %v519 = vadd.f32 %v150, %v518
    %v520 = vpop.f32.mrb[0].mxu0
    %521 = vmatprep.mubr.f32.mxu0 0.0
    %522 = vmatmul.mubr.f32.gmra.mrb[0].mxu0 %v298
    %v523 = vpop.f32.mrb[0].mxu0
    %v524 = vadd.f32 %v155, %v523
    %v525 = vpop.f32.mrb[0].mxu0
    %526 = vmatprep.mubr.f32.mxu0 0.0
    %527 = vmatmul.mubr.f32.gmra.mrb[0].mxu0 %v301
    %v528 = vpop.f32.mrb[0].mxu0
    %v529 = vadd.f32 %v160, %v528
    %v530 = vpop.f32.mrb[0].mxu0
    %531 = vmatprep.mubr.f32.mxu0 0.0
    %532 = vmatmul.mubr.f32.gmra.mrb[0].mxu0 %v304
    %v533 = vpop.f32.mrb[0].mxu0
    %v534 = vadd.f32 %v165, %v533
    %v535 = vpop.f32.mrb[0].mxu0
    %536 = vmatprep.mubr.f32.mxu0 0.0
    %537 = vmatmul.mubr.f32.gmra.mrb[0].mxu0 %v307
    %v538 = vpop.f32.mrb[0].mxu0
    %v539 = vadd.f32 %v170, %v538
    %v540 = vpop.f32.mrb[0].mxu0
    %541 = vmatprep.mubr.f32.mxu0 0.0
    %542 = vmatmul.mubr.f32.gmra.mrb[0].mxu0 %v310
    %v543 = vpop.f32.mrb[0].mxu0
    %v544 = vadd.f32 %v175, %v543
    %v545 = vpop.f32.mrb[0].mxu0
    %546 = vmatprep.mubr.f32.mxu0 0.0
    %547 = vmatmul.mubr.f32.gmra.mrb[0].mxu0 %v313
    %v548 = vpop.f32.mrb[0].mxu0
    %v549 = vadd.f32 %v180, %v548
    %v550 = vpop.f32.mrb[0].mxu0
    %551 = vmatprep.mubr.f32.mxu0 0.0
    %552 = vmatmul.mubr.f32.gmra.mrb[0].mxu0 %v316
    %v553 = vpop.f32.mrb[0].mxu0
    %v554 = vadd.f32 %v185, %v553
    %v555 = vpop.f32.mrb[0].mxu0
    %556 = vmatprep.mubr.f32.mxu0 0.0
    %557 = vmatmul.mubr.f32.gmra.mrb[0].mxu0 %v319
    %v558 = vpop.f32.mrb[0].mxu0
    %v559 = vadd.f32 %v190, %v558
    %v560 = vpop.f32.mrb[0].mxu0
    %561 = vmatprep.mubr.f32.mxu0 0.0
    %562 = vmatmul.mubr.f32.gmra.mrb[0].mxu0 %v322
    %v563 = vpop.f32.mrb[0].mxu0
    %v564 = vadd.f32 %v195, %v563
    %v565 = vpop.f32.mrb[0].mxu0
    %566 = vmatprep.mubr.f32.mxu0 0.0
    %567 = vmatmul.mubr.f32.gmra.mrb[0].mxu0 %v325
    %v568 = vpop.f32.mrb[0].mxu0
    %v569 = vadd.f32 %v200, %v568
    %v570 = vpop.f32.mrb[0].mxu0
    %571 = vmatprep.mubr.f32.mxu0 0.0
    %572 = vmatmul.mubr.f32.gmra.mrb[0].mxu0 %v328
    %v573 = vpop.f32.mrb[0].mxu0
    %v574 = vadd.f32 %v205, %v573
    %v575 = vpop.f32.mrb[0].mxu0
    %576 = vmatprep.mubr.f32.mxu0 0.0
    %577 = vmatmul.mubr.f32.gmra.mrb[0].mxu0 %v331
    %v578 = vpop.f32.mrb[0].mxu0
    %v579 = vadd.f32 %v210, %v578
    %v580 = vpop.f32.mrb[0].mxu0
    %581 = vmatprep.mubr.f32.mxu0 0.0
    %582 = vmatmul.mubr.f32.gmra.mrb[0].mxu0 %v334
    %v583 = vpop.f32.mrb[0].mxu0
    %v584 = vadd.f32 %v215, %v583
    %v585 = vpop.f32.mrb[0].mxu0
    %586 = vmatprep.mubr.f32.mxu0 0.0
    %587 = vmatmul.mubr.f32.gmra.mrb[0].mxu0 %v337
    %v588 = vpop.f32.mrb[0].mxu0
    %v589 = vadd.f32 %v220, %v588
    %v590 = vpop.f32.mrb[0].mxu0
    %591 = vmatprep.mubr.f32.mxu0 0.0
    %592 = vmatmul.mubr.f32.gmra.mrb[0].mxu0 %v340
    %v593 = vpop.f32.mrb[0].mxu0
    %v594 = vadd.f32 %v225, %v593
    %v595 = vpop.f32.mrb[0].mxu0
    %596 = vmatprep.mubr.f32.mxu0 0.0
    %597 = vmatmul.mubr.f32.gmra.mrb[0].mxu0 %v343
    %v598 = vpop.f32.mrb[0].mxu0
    %v599 = vadd.f32 %v230, %v598
    %v600 = vpop.f32.mrb[0].mxu0
    %601 = vmatprep.mubr.f32.mxu0 0.0
    %602 = vmatmul.mubr.f32.gmra.mrb[0].mxu0 %v346
    %v603 = vpop.f32.mrb[0].mxu0
    %v604 = vadd.f32 %v235, %v603
    %v605 = vpop.f32.mrb[0].mxu0
    %606 = vmatprep.mubr.f32.mxu0 0.0
    %607 = vmatmul.mubr.f32.gmra.mrb[0].mxu0 %v349
    %v608 = vpop.f32.mrb[0].mxu0
    %v609 = vadd.f32 %v240, %v608
    %v610 = vpop.f32.mrb[0].mxu0
    %611 = vmatprep.mubr.f32.mxu0 0.0
    %612 = vmatmul.mubr.f32.gmra.mrb[0].mxu0 %v352
    %v613 = vpop.f32.mrb[0].mxu0
    %v614 = vadd.f32 %v245, %v613
    %v615 = vpop.f32.mrb[0].mxu0
    %616 = vmatprep.mubr.f32.mxu0 0.0
    %617 = vmatmul.mubr.f32.gmra.mrb[0].mxu0 %v355
    %v618 = vpop.f32.mrb[0].mxu0
    %v619 = vadd.f32 %v250, %v618
    %v620 = vpop.f32.mrb[0].mxu0
    %621 = vmatprep.mubr.f32.mxu0 0.0
    %622 = vmatmul.mubr.f32.gmra.mrb[0].mxu0 %v358
    %v623 = vpop.f32.mrb[0].mxu0
    %v624 = vadd.f32 %v255, %v623
    %v625 = vpop.f32.mrb[0].mxu0
    %626 = vmatprep.mubr.f32.mxu0 0.0
    %627 = vmatmul.mubr.f32.gmra.mrb[0].mxu0 %v361
    %v628 = vpop.f32.mrb[0].mxu0
    %v629 = vadd.f32 %v260, %v628
    %v630 = vpop.f32.mrb[0].mxu0
    %631 = vmatprep.mubr.f32.mxu0 0.0
    %632 = vmatmul.mubr.f32.gmra.mrb[0].mxu0 %v364
    %v633 = vpop.f32.mrb[0].mxu0
    %v634 = vadd.f32 %v265, %v633
    %v635 = vpop.f32.mrb[0].mxu0
    %636 = vmatprep.mubr.f32.mxu0 0.0
    %637 = vmatmul.mubr.f32.gmra.mrb[0].mxu0 %v367
    %v638 = vpop.f32.mrb[0].mxu0
    %v639 = vadd.f32 %v270, %v638
    %v640 = vpop.f32.mrb[0].mxu0
    %641 = vdwg.mxu0
    %v642 = vmax.f32 %v484, 0.0
    %v643 = vmax.f32 %v489, 0.0
    %v644 = vmax.f32 %v494, 0.0
    %v645 = vmax.f32 %v499, 0.0
    %v646 = vmax.f32 %v504, 0.0
    %v647 = vmax.f32 %v509, 0.0
    %v648 = vmax.f32 %v514, 0.0
    %v649 = vmax.f32 %v519, 0.0
    %v650 = vmax.f32 %v524, 0.0
    %v651 = vmax.f32 %v529, 0.0
    %v652 = vmax.f32 %v534, 0.0
    %v653 = vmax.f32 %v539, 0.0
    %v654 = vmax.f32 %v544, 0.0
    %v655 = vmax.f32 %v549, 0.0
    %v656 = vmax.f32 %v554, 0.0
    %v657 = vmax.f32 %v559, 0.0
    %v658 = vmax.f32 %v564, 0.0
    %v659 = vmax.f32 %v569, 0.0
    %v660 = vmax.f32 %v574, 0.0
    %v661 = vmax.f32 %v579, 0.0
    %v662 = vmax.f32 %v584, 0.0
    %v663 = vmax.f32 %v589, 0.0
    %v664 = vmax.f32 %v594, 0.0
    %v665 = vmax.f32 %v599, 0.0
    %v666 = vld [vmem:[%s4] sm:$0xff]
    %v667 = vld [vmem:[%s4 + $0x8] sm:$0xff]
    %v668 = vld [vmem:[%s4 + $0x10] sm:$0xff]
    %v669 = vld [vmem:[%s4 + $0x18] sm:$0xff]
    %v670 = vld [vmem:[%s4 + $0x20] sm:$0xff]
    %v671 = vld [vmem:[%s4 + $0x28] sm:$0xff]
    %v672 = vld [vmem:[%s4 + $0x30] sm:$0xff]
    %v673 = vld [vmem:[%s4 + $0x38] sm:$0xff]
    %v674 = vld [vmem:[%s4 + $0x40] sm:$0xff]
    %v675 = vld [vmem:[%s4 + $0x48] sm:$0xff]
    %v676 = vld [vmem:[%s4 + $0x50] sm:$0xff]
    %v677 = vld [vmem:[%s4 + $0x58] sm:$0xff]
    %v678 = vld [vmem:[%s4 + $0x60] sm:$0xff]
    %v679 = vld [vmem:[%s4 + $0x68] sm:$0xff]
    %v680 = vld [vmem:[%s4 + $0x70] sm:$0xff]
    %v681 = vld [vmem:[%s4 + $0x78] sm:$0xff]
    %v682 = vld [vmem:[%s4 + $0x80] sm:$0xff]
    %v683 = vld [vmem:[%s4 + $0x88] sm:$0xff]
    %v684 = vld [vmem:[%s4 + $0x90] sm:$0xff]
    %v685 = vld [vmem:[%s4 + $0x98] sm:$0xff]
    %v686 = vld [vmem:[%s4 + $0xa0] sm:$0xff]
    %v687 = vld [vmem:[%s4 + $0xa8] sm:$0xff]
    %v688 = vld [vmem:[%s4 + $0xb0] sm:$0xff]
    %v689 = vld [vmem:[%s4 + $0xb8] sm:$0xff]
    %v690 = vld [vmem:[%s4 + $0xc0] sm:$0xff]
    %v691 = vld [vmem:[%s4 + $0xc8] sm:$0xff]
    %v692 = vld [vmem:[%s4 + $0xd0] sm:$0xff]
    %v693 = vld [vmem:[%s4 + $0xd8] sm:$0xff]
    %v694 = vld [vmem:[%s4 + $0xe0] sm:$0xff]
    %v695 = vld [vmem:[%s4 + $0xe8] sm:$0xff]
    %v696 = vld [vmem:[%s4 + $0xf0] sm:$0xff]
    %v697 = vld [vmem:[%s4 + $0xf8] sm:$0xff]
    %v698 = vld [vmem:[%s4 + $0x100] sm:$0xff]
    %v699 = vld [vmem:[%s4 + $0x108] sm:$0xff]
    %v700 = vld [vmem:[%s4 + $0x110] sm:$0xff]
    %v701 = vld [vmem:[%s4 + $0x118] sm:$0xff]
    %v702 = vld [vmem:[%s4 + $0x120] sm:$0xff]
    %v703 = vld [vmem:[%s4 + $0x128] sm:$0xff]
    %v704 = vld [vmem:[%s4 + $0x130] sm:$0xff]
    %v705 = vld [vmem:[%s4 + $0x138] sm:$0xff]
    %v706 = vld [vmem:[%s5] sm:$0xff]
    %v707 = vld [vmem:[%s5 + $0x8] sm:$0xff]
    %v708 = vld [vmem:[%s5 + $0x10] sm:$0xff]
    %v709 = vld [vmem:[%s5 + $0x18] sm:$0xff]
    %v710 = vld [vmem:[%s5 + $0x20] sm:$0xff]
    %v711 = vld [vmem:[%s5 + $0x28] sm:$0xff]
    %v712 = vld [vmem:[%s5 + $0x30] sm:$0xff]
    %v713 = vld [vmem:[%s5 + $0x38] sm:$0xff]
    %v714 = vld [vmem:[%s5 + $0x40] sm:$0xff]
    %v715 = vld [vmem:[%s5 + $0x48] sm:$0xff]
    %v716 = vld [vmem:[%s5 + $0x50] sm:$0xff]
    %v717 = vld [vmem:[%s5 + $0x58] sm:$0xff]
    %v718 = vld [vmem:[%s5 + $0x60] sm:$0xff]
    %v719 = vld [vmem:[%s5 + $0x68] sm:$0xff]
    %v720 = vld [vmem:[%s5 + $0x70] sm:$0xff]
    %v721 = vld [vmem:[%s5 + $0x78] sm:$0xff]
    %v722 = vld [vmem:[%s5 + $0x80] sm:$0xff]
    %v723 = vld [vmem:[%s5 + $0x88] sm:$0xff]
    %v724 = vld [vmem:[%s5 + $0x90] sm:$0xff]
    %v725 = vld [vmem:[%s5 + $0x98] sm:$0xff]
    %v726 = vld [vmem:[%s5 + $0xa0] sm:$0xff]
    %v727 = vld [vmem:[%s5 + $0xa8] sm:$0xff]
    %v728 = vld [vmem:[%s5 + $0xb0] sm:$0xff]
    %v729 = vld [vmem:[%s5 + $0xb8] sm:$0xff]
    %v730 = vld [vmem:[%s5 + $0xc0] sm:$0xff]
    %v731 = vld [vmem:[%s5 + $0xc8] sm:$0xff]
    %v732 = vld [vmem:[%s5 + $0xd0] sm:$0xff]
    %v733 = vld [vmem:[%s5 + $0xd8] sm:$0xff]
    %v734 = vld [vmem:[%s5 + $0xe0] sm:$0xff]
    %v735 = vld [vmem:[%s5 + $0xe8] sm:$0xff]
    %v736 = vld [vmem:[%s5 + $0xf0] sm:$0xff]
    %v737 = vld [vmem:[%s5 + $0xf8] sm:$0xff]
    %v738 = vld [vmem:[%s5 + $0x100] sm:$0xff]
    %v739 = vld [vmem:[%s5 + $0x108] sm:$0xff]
    %v740 = vld [vmem:[%s5 + $0x110] sm:$0xff]
    %v741 = vld [vmem:[%s5 + $0x118] sm:$0xff]
    %v742 = vld [vmem:[%s5 + $0x120] sm:$0xff]
    %v743 = vld [vmem:[%s5 + $0x128] sm:$0xff]
    %v744 = vld [vmem:[%s5 + $0x130] sm:$0xff]
    %v745 = vld [vmem:[%s5 + $0x138] sm:$0xff]
    %747 = vset.pattern.permute.xlu0 0
    %748 = vperm.xlu0 %747, %v706
    %v749 = vpop.permute.xlu0 %748
    %752 = vset.pattern.permute.xlu0 0
    %753 = vperm.xlu0 %752, %v707
    %v754 = vpop.permute.xlu0 %753
    %757 = vset.pattern.permute.xlu0 0
    %758 = vperm.xlu0 %757, %v708
    %v759 = vpop.permute.xlu0 %758
    %762 = vset.pattern.permute.xlu0 0
    %763 = vperm.xlu0 %762, %v709
    %v764 = vpop.permute.xlu0 %763
    %767 = vset.pattern.permute.xlu0 0
    %768 = vperm.xlu0 %767, %v710
    %v769 = vpop.permute.xlu0 %768
    %772 = vset.pattern.permute.xlu0 0
    %773 = vperm.xlu0 %772, %v711
    %v774 = vpop.permute.xlu0 %773
    %777 = vset.pattern.permute.xlu0 0
    %778 = vperm.xlu0 %777, %v712
    %v779 = vpop.permute.xlu0 %778
    %782 = vset.pattern.permute.xlu0 0
    %783 = vperm.xlu0 %782, %v713
    %v784 = vpop.permute.xlu0 %783
    %787 = vset.pattern.permute.xlu0 0
    %788 = vperm.xlu0 %787, %v714
    %v789 = vpop.permute.xlu0 %788
    %792 = vset.pattern.permute.xlu0 0
    %793 = vperm.xlu0 %792, %v715
    %v794 = vpop.permute.xlu0 %793
    %797 = vset.pattern.permute.xlu0 0
    %798 = vperm.xlu0 %797, %v716
    %v799 = vpop.permute.xlu0 %798
    %802 = vset.pattern.permute.xlu0 0
    %803 = vperm.xlu0 %802, %v717
    %v804 = vpop.permute.xlu0 %803
    %807 = vset.pattern.permute.xlu0 0
    %808 = vperm.xlu0 %807, %v718
    %v809 = vpop.permute.xlu0 %808
    %812 = vset.pattern.permute.xlu0 0
    %813 = vperm.xlu0 %812, %v719
    %v814 = vpop.permute.xlu0 %813
    %817 = vset.pattern.permute.xlu0 0
    %818 = vperm.xlu0 %817, %v720
    %v819 = vpop.permute.xlu0 %818
    %822 = vset.pattern.permute.xlu0 0
    %823 = vperm.xlu0 %822, %v721
    %v824 = vpop.permute.xlu0 %823
    %827 = vset.pattern.permute.xlu0 0
    %828 = vperm.xlu0 %827, %v722
    %v829 = vpop.permute.xlu0 %828
    %832 = vset.pattern.permute.xlu0 0
    %833 = vperm.xlu0 %832, %v723
    %v834 = vpop.permute.xlu0 %833
    %837 = vset.pattern.permute.xlu0 0
    %838 = vperm.xlu0 %837, %v724
    %v839 = vpop.permute.xlu0 %838
    %842 = vset.pattern.permute.xlu0 0
    %843 = vperm.xlu0 %842, %v725
    %v844 = vpop.permute.xlu0 %843
    %847 = vset.pattern.permute.xlu0 0
    %848 = vperm.xlu0 %847, %v726
    %v849 = vpop.permute.xlu0 %848
    %852 = vset.pattern.permute.xlu0 0
    %853 = vperm.xlu0 %852, %v727
    %v854 = vpop.permute.xlu0 %853
    %857 = vset.pattern.permute.xlu0 0
    %858 = vperm.xlu0 %857, %v728
    %v859 = vpop.permute.xlu0 %858
    %862 = vset.pattern.permute.xlu0 0
    %863 = vperm.xlu0 %862, %v729
    %v864 = vpop.permute.xlu0 %863
    %867 = vset.pattern.permute.xlu0 0
    %868 = vperm.xlu0 %867, %v730
    %v869 = vpop.permute.xlu0 %868
    %872 = vset.pattern.permute.xlu0 0
    %873 = vperm.xlu0 %872, %v731
    %v874 = vpop.permute.xlu0 %873
    %877 = vset.pattern.permute.xlu0 0
    %878 = vperm.xlu0 %877, %v732
    %v879 = vpop.permute.xlu0 %878
    %882 = vset.pattern.permute.xlu0 0
    %883 = vperm.xlu0 %882, %v733
    %v884 = vpop.permute.xlu0 %883
    %887 = vset.pattern.permute.xlu0 0
    %888 = vperm.xlu0 %887, %v734
    %v889 = vpop.permute.xlu0 %888
    %892 = vset.pattern.permute.xlu0 0
    %893 = vperm.xlu0 %892, %v735
    %v894 = vpop.permute.xlu0 %893
    %897 = vset.pattern.permute.xlu0 0
    %898 = vperm.xlu0 %897, %v736
    %v899 = vpop.permute.xlu0 %898
    %902 = vset.pattern.permute.xlu0 0
    %903 = vperm.xlu0 %902, %v737
    %v904 = vpop.permute.xlu0 %903
    %907 = vset.pattern.permute.xlu0 0
    %908 = vperm.xlu0 %907, %v738
    %v909 = vpop.permute.xlu0 %908
    %912 = vset.pattern.permute.xlu0 0
    %913 = vperm.xlu0 %912, %v739
    %v914 = vpop.permute.xlu0 %913
    %917 = vset.pattern.permute.xlu0 0
    %918 = vperm.xlu0 %917, %v740
    %v919 = vpop.permute.xlu0 %918
    %922 = vset.pattern.permute.xlu0 0
    %923 = vperm.xlu0 %922, %v741
    %v924 = vpop.permute.xlu0 %923
    %927 = vset.pattern.permute.xlu0 0
    %928 = vperm.xlu0 %927, %v742
    %v929 = vpop.permute.xlu0 %928
    %932 = vset.pattern.permute.xlu0 0
    %933 = vperm.xlu0 %932, %v743
    %v934 = vpop.permute.xlu0 %933
    %937 = vset.pattern.permute.xlu0 0
    %938 = vperm.xlu0 %937, %v744
    %v939 = vpop.permute.xlu0 %938
    %942 = vset.pattern.permute.xlu0 0
    %943 = vperm.xlu0 %942, %v745
    %v944 = vpop.permute.xlu0 %943
    %946 = vmatprep.subr.mxu0 0.0
    %947 = vmatpush1.msra.mxu0 %v642
    %948 = vmatprep.subr.mxu0 0.0
    %949 = vmatpush1.msra.mxu0 %v643
    %950 = vmatprep.subr.mxu0 0.0
    %951 = vmatpush1.msra.mxu0 %v644
    %952 = vmatprep.subr.mxu0 0.0
    %953 = vmatpush1.msra.mxu0 %v645
    %954 = vmatprep.subr.mxu0 0.0
    %955 = vmatpush1.msra.mxu0 %v646
    %956 = vmatprep.subr.mxu0 0.0
    %957 = vmatpush1.msra.mxu0 %v647
    %958 = vmatprep.subr.mxu0 0.0
    %959 = vmatpush1.msra.mxu0 %v648
    %960 = vmatprep.subr.mxu0 0.0
    %961 = vmatpush1.msra.mxu0 %v649
    %962 = vmatprep.subr.mxu0 0.0
    %963 = vmatpush1.msra.mxu0 %v650
    %964 = vmatprep.subr.mxu0 0.0
    %965 = vmatpush1.msra.mxu0 %v651
    %966 = vmatprep.subr.mxu0 0.0
    %967 = vmatpush1.msra.mxu0 %v652
    %968 = vmatprep.subr.mxu0 0.0
    %969 = vmatpush1.msra.mxu0 %v653
    %970 = vmatprep.subr.mxu0 0.0
    %971 = vmatpush1.msra.mxu0 %v654
    %972 = vmatprep.subr.mxu0 0.0
    %973 = vmatpush1.msra.mxu0 %v655
    %974 = vmatprep.subr.mxu0 0.0
    %975 = vmatpush1.msra.mxu0 %v656
    %976 = vmatprep.subr.mxu0 0.0
    %977 = vmatpush1.msra.mxu0 %v657
    %978 = vmatprep.subr.mxu0 0.0
    %979 = vmatpush1.msra.mxu0 0.0
    %980 = vmatprep.subr.mxu0 0.0
    %981 = vmatpush1.msra.mxu0 0.0
    %982 = vmatprep.subr.mxu0 0.0
    %983 = vmatpush1.msra.mxu0 0.0
    %984 = vmatprep.subr.mxu0 0.0
    %985 = vmatpush1.msra.mxu0 0.0
    %986 = vmatprep.subr.mxu0 0.0
    %987 = vmatpush1.msra.mxu0 0.0
    %988 = vmatprep.subr.mxu0 0.0
    %989 = vmatpush1.msra.mxu0 0.0
    %990 = vmatprep.subr.mxu0 0.0
    %991 = vmatpush1.msra.mxu0 0.0
    %992 = vmatprep.subr.mxu0 0.0
    %993 = vmatpush1.msra.mxu0 0.0
    %994 = vmatprep.subr.mxu0 0.0
    %995 = vmatpush1.msra.mxu0 0.0
    %996 = vmatprep.subr.mxu0 0.0
    %997 = vmatpush1.msra.mxu0 0.0
    %998 = vmatprep.subr.mxu0 0.0
    %999 = vmatpush1.msra.mxu0 0.0
    %1000 = vmatprep.subr.mxu0 0.0
    %1001 = vmatpush1.msra.mxu0 0.0
    %1002 = vmatprep.subr.mxu0 0.0
    %1003 = vmatpush1.msra.mxu0 0.0
    %1004 = vmatprep.subr.mxu0 0.0
    %1005 = vmatpush1.msra.mxu0 0.0
    %1006 = vmatprep.subr.mxu0 0.0
    %1007 = vmatpush1.msra.mxu0 0.0
    %1008 = vmatprep.subr.mxu0 0.0
    %1009 = vmatpush1.msra.mxu0 0.0
    %1010 = vmatprep.mubr.f32.mxu0 0.0
    %1011 = vmatmul.mubr.f32.gmra.mrb[0].mxu0 %v666
    %v1012 = vpop.f32.mrb[0].mxu0
    %v1013 = vadd.f32 %v749, %v1012
    %v1014 = vpop.f32.mrb[0].mxu0
    %1015 = vmatprep.mubr.f32.mxu0 0.0
    %1016 = vmatmul.mubr.f32.gmra.mrb[0].mxu0 %v667
    %v1017 = vpop.f32.mrb[0].mxu0
    %v1018 = vadd.f32 %v754, %v1017
    %v1019 = vpop.f32.mrb[0].mxu0
    %1020 = vmatprep.mubr.f32.mxu0 0.0
    %1021 = vmatmul.mubr.f32.gmra.mrb[0].mxu0 %v668
    %v1022 = vpop.f32.mrb[0].mxu0
    %v1023 = vadd.f32 %v759, %v1022
    %v1024 = vpop.f32.mrb[0].mxu0
    %1025 = vmatprep.mubr.f32.mxu0 0.0
    %1026 = vmatmul.mubr.f32.gmra.mrb[0].mxu0 %v669
    %v1027 = vpop.f32.mrb[0].mxu0
    %v1028 = vadd.f32 %v764, %v1027
    %v1029 = vpop.f32.mrb[0].mxu0
    %1030 = vmatprep.mubr.f32.mxu0 0.0
    %1031 = vmatmul.mubr.f32.gmra.mrb[0].mxu0 %v670
    %v1032 = vpop.f32.mrb[0].mxu0
    %v1033 = vadd.f32 %v769, %v1032
    %v1034 = vpop.f32.mrb[0].mxu0
    %1035 = vmatprep.mubr.f32.mxu0 0.0
    %1036 = vmatmul.mubr.f32.gmra.mrb[0].mxu0 %v671
    %v1037 = vpop.f32.mrb[0].mxu0
    %v1038 = vadd.f32 %v774, %v1037
    %v1039 = vpop.f32.mrb[0].mxu0
    %1040 = vmatprep.mubr.f32.mxu0 0.0
    %1041 = vmatmul.mubr.f32.gmra.mrb[0].mxu0 %v672
    %v1042 = vpop.f32.mrb[0].mxu0
    %v1043 = vadd.f32 %v779, %v1042
    %v1044 = vpop.f32.mrb[0].mxu0
    %1045 = vmatprep.mubr.f32.mxu0 0.0
    %1046 = vmatmul.mubr.f32.gmra.mrb[0].mxu0 %v673
    %v1047 = vpop.f32.mrb[0].mxu0
    %v1048 = vadd.f32 %v784, %v1047
    %v1049 = vpop.f32.mrb[0].mxu0
    %1050 = vmatprep.mubr.f32.mxu0 0.0
    %1051 = vmatmul.mubr.f32.gmra.mrb[0].mxu0 %v674
    %v1052 = vpop.f32.mrb[0].mxu0
    %v1053 = vadd.f32 %v789, %v1052
    %v1054 = vpop.f32.mrb[0].mxu0
    %1055 = vmatprep.mubr.f32.mxu0 0.0
    %1056 = vmatmul.mubr.f32.gmra.mrb[0].mxu0 %v675
    %v1057 = vpop.f32.mrb[0].mxu0
    %v1058 = vadd.f32 %v794, %v1057
    %v1059 = vpop.f32.mrb[0].mxu0
    %1060 = vmatprep.mubr.f32.mxu0 0.0
    %1061 = vmatmul.mubr.f32.gmra.mrb[0].mxu0 %v676
    %v1062 = vpop.f32.mrb[0].mxu0
    %v1063 = vadd.f32 %v799, %v1062
    %v1064 = vpop.f32.mrb[0].mxu0
    %1065 = vmatprep.mubr.f32.mxu0 0.0
    %1066 = vmatmul.mubr.f32.gmra.mrb[0].mxu0 %v677
    %v1067 = vpop.f32.mrb[0].mxu0
    %v1068 = vadd.f32 %v804, %v1067
    %v1069 = vpop.f32.mrb[0].mxu0
    %1070 = vmatprep.mubr.f32.mxu0 0.0
    %1071 = vmatmul.mubr.f32.gmra.mrb[0].mxu0 %v678
    %v1072 = vpop.f32.mrb[0].mxu0
    %v1073 = vadd.f32 %v809, %v1072
    %v1074 = vpop.f32.mrb[0].mxu0
    %1075 = vmatprep.mubr.f32.mxu0 0.0
    %1076 = vmatmul.mubr.f32.gmra.mrb[0].mxu0 %v679
    %v1077 = vpop.f32.mrb[0].mxu0
    %v1078 = vadd.f32 %v814, %v1077
    %v1079 = vpop.f32.mrb[0].mxu0
    %1080 = vmatprep.mubr.f32.mxu0 0.0
    %1081 = vmatmul.mubr.f32.gmra.mrb[0].mxu0 %v680
    %v1082 = vpop.f32.mrb[0].mxu0
    %v1083 = vadd.f32 %v819, %v1082
    %v1084 = vpop.f32.mrb[0].mxu0
    %1085 = vmatprep.mubr.f32.mxu0 0.0
    %1086 = vmatmul.mubr.f32.gmra.mrb[0].mxu0 %v681
    %v1087 = vpop.f32.mrb[0].mxu0
    %v1088 = vadd.f32 %v824, %v1087
    %v1089 = vpop.f32.mrb[0].mxu0
    %1090 = vmatprep.mubr.f32.mxu0 0.0
    %1091 = vmatmul.mubr.f32.gmra.mrb[0].mxu0 %v682
    %v1092 = vpop.f32.mrb[0].mxu0
    %v1093 = vadd.f32 %v829, %v1092
    %v1094 = vpop.f32.mrb[0].mxu0
    %1095 = vmatprep.mubr.f32.mxu0 0.0
    %1096 = vmatmul.mubr.f32.gmra.mrb[0].mxu0 %v683
    %v1097 = vpop.f32.mrb[0].mxu0
    %v1098 = vadd.f32 %v834, %v1097
    %v1099 = vpop.f32.mrb[0].mxu0
    %1100 = vmatprep.mubr.f32.mxu0 0.0
    %1101 = vmatmul.mubr.f32.gmra.mrb[0].mxu0 %v684
    %v1102 = vpop.f32.mrb[0].mxu0
    %v1103 = vadd.f32 %v839, %v1102
    %v1104 = vpop.f32.mrb[0].mxu0
    %1105 = vmatprep.mubr.f32.mxu0 0.0
    %1106 = vmatmul.mubr.f32.gmra.mrb[0].mxu0 %v685
    %v1107 = vpop.f32.mrb[0].mxu0
    %v1108 = vadd.f32 %v844, %v1107
    %v1109 = vpop.f32.mrb[0].mxu0
    %1110 = vmatprep.mubr.f32.mxu0 0.0
    %1111 = vmatmul.mubr.f32.gmra.mrb[0].mxu0 %v686
    %v1112 = vpop.f32.mrb[0].mxu0
    %v1113 = vadd.f32 %v849, %v1112
    %v1114 = vpop.f32.mrb[0].mxu0
    %1115 = vmatprep.mubr.f32.mxu0 0.0
    %1116 = vmatmul.mubr.f32.gmra.mrb[0].mxu0 %v687
    %v1117 = vpop.f32.mrb[0].mxu0
    %v1118 = vadd.f32 %v854, %v1117
    %v1119 = vpop.f32.mrb[0].mxu0
    %1120 = vmatprep.mubr.f32.mxu0 0.0
    %1121 = vmatmul.mubr.f32.gmra.mrb[0].mxu0 %v688
    %v1122 = vpop.f32.mrb[0].mxu0
    %v1123 = vadd.f32 %v859, %v1122
    %v1124 = vpop.f32.mrb[0].mxu0
    %1125 = vmatprep.mubr.f32.mxu0 0.0
    %1126 = vmatmul.mubr.f32.gmra.mrb[0].mxu0 %v689
    %v1127 = vpop.f32.mrb[0].mxu0
    %v1128 = vadd.f32 %v864, %v1127
    %v1129 = vpop.f32.mrb[0].mxu0
    %1130 = vmatprep.mubr.f32.mxu0 0.0
    %1131 = vmatmul.mubr.f32.gmra.mrb[0].mxu0 %v690
    %v1132 = vpop.f32.mrb[0].mxu0
    %v1133 = vadd.f32 %v869, %v1132
    %v1134 = vpop.f32.mrb[0].mxu0
    %1135 = vmatprep.mubr.f32.mxu0 0.0
    %1136 = vmatmul.mubr.f32.gmra.mrb[0].mxu0 %v691
    %v1137 = vpop.f32.mrb[0].mxu0
    %v1138 = vadd.f32 %v874, %v1137
    %v1139 = vpop.f32.mrb[0].mxu0
    %1140 = vmatprep.mubr.f32.mxu0 0.0
    %1141 = vmatmul.mubr.f32.gmra.mrb[0].mxu0 %v692
    %v1142 = vpop.f32.mrb[0].mxu0
    %v1143 = vadd.f32 %v879, %v1142
    %v1144 = vpop.f32.mrb[0].mxu0
    %1145 = vmatprep.mubr.f32.mxu0 0.0
    %1146 = vmatmul.mubr.f32.gmra.mrb[0].mxu0 %v693
    %v1147 = vpop.f32.mrb[0].mxu0
    %v1148 = vadd.f32 %v884, %v1147
    %v1149 = vpop.f32.mrb[0].mxu0
    %1150 = vmatprep.mubr.f32.mxu0 0.0
    %1151 = vmatmul.mubr.f32.gmra.mrb[0].mxu0 %v694
    %v1152 = vpop.f32.mrb[0].mxu0
    %v1153 = vadd.f32 %v889, %v1152
    %v1154 = vpop.f32.mrb[0].mxu0
    %1155 = vmatprep.mubr.f32.mxu0 0.0
    %1156 = vmatmul.mubr.f32.gmra.mrb[0].mxu0 %v695
    %v1157 = vpop.f32.mrb[0].mxu0
    %v1158 = vadd.f32 %v894, %v1157
    %v1159 = vpop.f32.mrb[0].mxu0
    %1160 = vmatprep.mubr.f32.mxu0 0.0
    %1161 = vmatmul.mubr.f32.gmra.mrb[0].mxu0 %v696
    %v1162 = vpop.f32.mrb[0].mxu0
    %v1163 = vadd.f32 %v899, %v1162
    %v1164 = vpop.f32.mrb[0].mxu0
    %1165 = vmatprep.mubr.f32.mxu0 0.0
    %1166 = vmatmul.mubr.f32.gmra.mrb[0].mxu0 %v697
    %v1167 = vpop.f32.mrb[0].mxu0
    %v1168 = vadd.f32 %v904, %v1167
    %v1169 = vpop.f32.mrb[0].mxu0
    %1170 = vmatprep.mubr.f32.mxu0 0.0
    %1171 = vmatmul.mubr.f32.gmra.mrb[0].mxu0 %v698
    %v1172 = vpop.f32.mrb[0].mxu0
    %v1173 = vadd.f32 %v909, %v1172
    %v1174 = vpop.f32.mrb[0].mxu0
    %1175 = vmatprep.mubr.f32.mxu0 0.0
    %1176 = vmatmul.mubr.f32.gmra.mrb[0].mxu0 %v699
    %v1177 = vpop.f32.mrb[0].mxu0
    %v1178 = vadd.f32 %v914, %v1177
    %v1179 = vpop.f32.mrb[0].mxu0
    %1180 = vmatprep.mubr.f32.mxu0 0.0
    %1181 = vmatmul.mubr.f32.gmra.mrb[0].mxu0 %v700
    %v1182 = vpop.f32.mrb[0].mxu0
    %v1183 = vadd.f32 %v919, %v1182
    %v1184 = vpop.f32.mrb[0].mxu0
    %1185 = vmatprep.mubr.f32.mxu0 0.0
    %1186 = vmatmul.mubr.f32.gmra.mrb[0].mxu0 %v701
    %v1187 = vpop.f32.mrb[0].mxu0
    %v1188 = vadd.f32 %v924, %v1187
    %v1189 = vpop.f32.mrb[0].mxu0
    %1190 = vmatprep.mubr.f32.mxu0 0.0
    %1191 = vmatmul.mubr.f32.gmra.mrb[0].mxu0 %v702
    %v1192 = vpop.f32.mrb[0].mxu0
    %v1193 = vadd.f32 %v929, %v1192
    %v1194 = vpop.f32.mrb[0].mxu0
    %1195 = vmatprep.mubr.f32.mxu0 0.0
    %1196 = vmatmul.mubr.f32.gmra.mrb[0].mxu0 %v703
    %v1197 = vpop.f32.mrb[0].mxu0
    %v1198 = vadd.f32 %v934, %v1197
    %v1199 = vpop.f32.mrb[0].mxu0
    %1200 = vmatprep.mubr.f32.mxu0 0.0
    %1201 = vmatmul.mubr.f32.gmra.mrb[0].mxu0 %v704
    %v1202 = vpop.f32.mrb[0].mxu0
    %v1203 = vadd.f32 %v939, %v1202
    %v1204 = vpop.f32.mrb[0].mxu0
    %1205 = vmatprep.mubr.f32.mxu0 0.0
    %1206 = vmatmul.mubr.f32.gmra.mrb[0].mxu0 %v705
    %v1207 = vpop.f32.mrb[0].mxu0
    %v1208 = vadd.f32 %v944, %v1207
    %v1209 = vpop.f32.mrb[0].mxu0
    %1210 = vdwg.mxu0
    %v1211 = vand.u32 2147483647, %v1013
    %v1212 = vand.u32 2147483647, %v1018
    %v1213 = vand.u32 2147483647, %v1023
    %v1214 = vand.u32 2147483647, %v1028
    %v1215 = vand.u32 2147483647, %v1033
    %v1216 = vand.u32 2147483647, %v1038
    %v1217 = vand.u32 2147483647, %v1043
    %v1218 = vand.u32 2147483647, %v1048
    %v1219 = vand.u32 2147483647, %v1053
    %v1220 = vand.u32 2147483647, %v1058
    %v1221 = vand.u32 2147483647, %v1063
    %v1222 = vand.u32 2147483647, %v1068
    %v1223 = vand.u32 2147483647, %v1073
    %v1224 = vand.u32 2147483647, %v1078
    %v1225 = vand.u32 2147483647, %v1083
    %v1226 = vand.u32 2147483647, %v1088
    %v1227 = vand.u32 2147483647, %v1093
    %v1228 = vand.u32 2147483647, %v1098
    %v1229 = vand.u32 2147483647, %v1103
    %v1230 = vand.u32 2147483647, %v1108
    %v1231 = vand.u32 2147483647, %v1113
    %v1232 = vand.u32 2147483647, %v1118
    %v1233 = vand.u32 2147483647, %v1123
    %v1234 = vand.u32 2147483647, %v1128
    %v1235 = vand.u32 2147483647, %v1133
    %v1236 = vand.u32 2147483647, %v1138
    %v1237 = vand.u32 2147483647, %v1143
    %v1238 = vand.u32 2147483647, %v1148
    %v1239 = vand.u32 2147483647, %v1153
    %v1240 = vand.u32 2147483647, %v1158
    %v1241 = vand.u32 2147483647, %v1163
    %v1242 = vand.u32 2147483647, %v1168
    %v1243 = vand.u32 2147483647, %v1173
    %v1244 = vand.u32 2147483647, %v1178
    %v1245 = vand.u32 2147483647, %v1183
    %v1246 = vand.u32 2147483647, %v1188
    %v1247 = vand.u32 2147483647, %v1193
    %v1248 = vand.u32 2147483647, %v1198
    %v1249 = vand.u32 2147483647, %v1203
    %v1250 = vand.u32 2147483647, %v1208
    %v1251 = vld [vmem:[%s0] sm:$0xf]
    %v1252 = vlaneseq
    %v1253 = vshrl.u32 %v1252, 7
    %v1254 = vsub.s32 0, %v1253
    %v1255 = vrot.slane %v1251, %v1254
    %v1256 = vmul.f32 %v1255, %v1211
    %v1257 = vmul.f32 %v1255, %v1212
    %v1258 = vmul.f32 %v1255, %v1213
    %v1259 = vmul.f32 %v1255, %v1214
    %v1260 = vmul.f32 %v1255, %v1215
    %v1261 = vmul.f32 %v1255, %v1216
    %v1262 = vmul.f32 %v1255, %v1217
    %v1263 = vmul.f32 %v1255, %v1218
    %v1264 = vadd.f32 %v604, %v1256
    %v1265 = vadd.f32 %v609, %v1257
    %v1266 = vadd.f32 %v614, %v1258
    %v1267 = vadd.f32 %v619, %v1259
    %v1268 = vadd.f32 %v624, %v1260
    %v1269 = vadd.f32 %v629, %v1261
    %v1270 = vadd.f32 %v634, %v1262
    %v1271 = vadd.f32 %v639, %v1263
    %v1272 = vlaneseq
    %v1273 = vshrl.u32 %v1272, 7
    %v1274 = vsub.s32 1, %v1273
    %v1275 = vrot.slane %v1251, %v1274
    %v1276 = vmul.f32 %v1275, %v1219
    %v1277 = vmul.f32 %v1275, %v1220
    %v1278 = vmul.f32 %v1275, %v1221
    %v1279 = vmul.f32 %v1275, %v1222
    %v1280 = vmul.f32 %v1275, %v1223
    %v1281 = vmul.f32 %v1275, %v1224
    %v1282 = vmul.f32 %v1275, %v1225
    %v1283 = vmul.f32 %v1275, %v1226
    %v1284 = vadd.f32 %v1264, %v1276
    %v1285 = vadd.f32 %v1265, %v1277
    %v1286 = vadd.f32 %v1266, %v1278
    %v1287 = vadd.f32 %v1267, %v1279
    %v1288 = vadd.f32 %v1268, %v1280
    %v1289 = vadd.f32 %v1269, %v1281
    %v1290 = vadd.f32 %v1270, %v1282
    %v1291 = vadd.f32 %v1271, %v1283
    %v1292 = vlaneseq
    %v1293 = vshrl.u32 %v1292, 7
    %v1294 = vsub.s32 2, %v1293
    %v1295 = vrot.slane %v1251, %v1294
    %v1296 = vmul.f32 %v1295, %v1227
    %v1297 = vmul.f32 %v1295, %v1228
    %v1298 = vmul.f32 %v1295, %v1229
    %v1299 = vmul.f32 %v1295, %v1230
    %v1300 = vmul.f32 %v1295, %v1231
    %v1301 = vmul.f32 %v1295, %v1232
    %v1302 = vmul.f32 %v1295, %v1233
    %v1303 = vmul.f32 %v1295, %v1234
    %v1304 = vadd.f32 %v1284, %v1296
    %v1305 = vadd.f32 %v1285, %v1297
    %v1306 = vadd.f32 %v1286, %v1298
    %v1307 = vadd.f32 %v1287, %v1299
    %v1308 = vadd.f32 %v1288, %v1300
    %v1309 = vadd.f32 %v1289, %v1301
    %v1310 = vadd.f32 %v1290, %v1302
    %v1311 = vadd.f32 %v1291, %v1303
    %v1312 = vlaneseq
    %v1313 = vshrl.u32 %v1312, 7
    %v1314 = vsub.s32 3, %v1313
    %v1315 = vrot.slane %v1251, %v1314
    %v1316 = vmul.f32 %v1315, %v1235
    %v1317 = vmul.f32 %v1315, %v1236
    %v1318 = vmul.f32 %v1315, %v1237
    %v1319 = vmul.f32 %v1315, %v1238
    %v1320 = vmul.f32 %v1315, %v1239
    %v1321 = vmul.f32 %v1315, %v1240
    %v1322 = vmul.f32 %v1315, %v1241
    %v1323 = vmul.f32 %v1315, %v1242
    %v1324 = vadd.f32 %v1304, %v1316
    %v1325 = vadd.f32 %v1305, %v1317
    %v1326 = vadd.f32 %v1306, %v1318
    %v1327 = vadd.f32 %v1307, %v1319
    %v1328 = vadd.f32 %v1308, %v1320
    %v1329 = vadd.f32 %v1309, %v1321
    %v1330 = vadd.f32 %v1310, %v1322
    %v1331 = vadd.f32 %v1311, %v1323
    %vm1332 = vcmp.gt.f32.partialorder %v1324, 0.0
    %vm1333 = vcmp.gt.f32.partialorder %v1325, 0.0
    %vm1334 = vcmp.gt.f32.partialorder %v1326, 0.0
    %vm1335 = vcmp.gt.f32.partialorder %v1327, 0.0
    %vm1336 = vcmp.gt.f32.partialorder %v1328, 0.0
    %vm1337 = vcmp.gt.f32.partialorder %v1329, 0.0
    %vm1338 = vcmp.gt.f32.partialorder %v1330, 0.0
    %vm1339 = vcmp.gt.f32.partialorder %v1331, 0.0
    %v1340 = vmin.f32 %v1324, 0.0
    %v1341 = vmin.f32 %v1325, 0.0
    %v1342 = vmin.f32 %v1326, 0.0
    %v1343 = vmin.f32 %v1327, 0.0
    %v1344 = vmin.f32 %v1328, 0.0
    %v1345 = vmin.f32 %v1329, 0.0
    %v1346 = vmin.f32 %v1330, 0.0
    %v1347 = vmin.f32 %v1331, 0.0
    %v1348 = vmul.f32 %v1340, 1.442695
    %v1349 = vpow.pop %v1348
    %v1350 = vmul.f32 %v1341, 1.442695
    %v1351 = vpow.pop %v1350
    %v1352 = vmul.f32 %v1342, 1.442695
    %v1353 = vpow.pop %v1352
    %v1354 = vmul.f32 %v1343, 1.442695
    %v1355 = vpow.pop %v1354
    %v1356 = vmul.f32 %v1344, 1.442695
    %v1357 = vpow.pop %v1356
    %v1358 = vmul.f32 %v1345, 1.442695
    %v1359 = vpow.pop %v1358
    %v1360 = vmul.f32 %v1346, 1.442695
    %v1361 = vpow.pop %v1360
    %v1362 = vmul.f32 %v1347, 1.442695
    %v1363 = vpow.pop %v1362
    %v1364 = vsub.f32 %v1349, 1.0
    %v1365 = vsub.f32 %v1351, 1.0
    %v1366 = vsub.f32 %v1353, 1.0
    %v1367 = vsub.f32 %v1355, 1.0
    %v1368 = vsub.f32 %v1357, 1.0
    %v1369 = vsub.f32 %v1359, 1.0
    %v1370 = vsub.f32 %v1361, 1.0
    %v1371 = vsub.f32 %v1363, 1.0
    %v1372 = vsel %vm1332, %v1324, %v1364
    %v1373 = vsel %vm1333, %v1325, %v1365
    %v1374 = vsel %vm1334, %v1326, %v1366
    %v1375 = vsel %vm1335, %v1327, %v1367
    %v1376 = vsel %vm1336, %v1328, %v1368
    %v1377 = vsel %vm1337, %v1329, %v1369
    %v1378 = vsel %vm1338, %v1330, %v1370
    %v1379 = vsel %vm1339, %v1331, %v1371
    %v1380 = vmul.f32 %v1372, %v1243
    %v1381 = vmul.f32 %v1373, %v1244
    %v1382 = vmul.f32 %v1374, %v1245
    %v1383 = vmul.f32 %v1375, %v1246
    %v1384 = vmul.f32 %v1376, %v1247
    %v1385 = vmul.f32 %v1377, %v1248
    %v1386 = vmul.f32 %v1378, %v1249
    %v1387 = vmul.f32 %v1379, %v1250
    %v1388 = vld [vmem:[%s6] sm:$0xff]
    %v1389 = vld [vmem:[%s6 + $0x8] sm:$0xff]
    %v1390 = vld [vmem:[%s6 + $0x10] sm:$0xff]
    %v1391 = vld [vmem:[%s6 + $0x18] sm:$0xff]
    %v1392 = vld [vmem:[%s6 + $0x20] sm:$0xff]
    %v1393 = vld [vmem:[%s6 + $0x28] sm:$0xff]
    %v1394 = vld [vmem:[%s6 + $0x30] sm:$0xff]
    %v1395 = vld [vmem:[%s6 + $0x38] sm:$0xff]
    %1397 = vset.pattern.permute.xlu0 0
    %1398 = vperm.xlu0 %1397, %v1388
    %v1399 = vpop.permute.xlu0 %1398
    %1402 = vset.pattern.permute.xlu0 0
    %1403 = vperm.xlu0 %1402, %v1389
    %v1404 = vpop.permute.xlu0 %1403
    %1407 = vset.pattern.permute.xlu0 0
    %1408 = vperm.xlu0 %1407, %v1390
    %v1409 = vpop.permute.xlu0 %1408
    %1412 = vset.pattern.permute.xlu0 0
    %1413 = vperm.xlu0 %1412, %v1391
    %v1414 = vpop.permute.xlu0 %1413
    %1417 = vset.pattern.permute.xlu0 0
    %1418 = vperm.xlu0 %1417, %v1392
    %v1419 = vpop.permute.xlu0 %1418
    %1422 = vset.pattern.permute.xlu0 0
    %1423 = vperm.xlu0 %1422, %v1393
    %v1424 = vpop.permute.xlu0 %1423
    %1427 = vset.pattern.permute.xlu0 0
    %1428 = vperm.xlu0 %1427, %v1394
    %v1429 = vpop.permute.xlu0 %1428
    %1432 = vset.pattern.permute.xlu0 0
    %1433 = vperm.xlu0 %1432, %v1395
    %v1434 = vpop.permute.xlu0 %1433
    %v1436 = vmul.f32 %v1399, %v658
    %v1437 = vmul.f32 %v1404, %v659
    %v1438 = vmul.f32 %v1409, %v660
    %v1439 = vmul.f32 %v1414, %v661
    %v1440 = vmul.f32 %v1419, %v662
    %v1441 = vmul.f32 %v1424, %v663
    %v1442 = vmul.f32 %v1429, %v664
    %v1443 = vmul.f32 %v1434, %v665
    %v1444 = vadd.f32 %v1380, %v1436
    %v1445 = vadd.f32 %v1381, %v1437
    %v1446 = vadd.f32 %v1382, %v1438
    %v1447 = vadd.f32 %v1383, %v1439
    %v1448 = vadd.f32 %v1384, %v1440
    %v1449 = vadd.f32 %v1385, %v1441
    %v1450 = vadd.f32 %v1386, %v1442
    %v1451 = vadd.f32 %v1387, %v1443
    %v1452 = vadd.f32 %v1444, %v1445
    %v1453 = vadd.f32 %v1452, %v1446
    %v1454 = vadd.f32 %v1453, %v1447
    %v1455 = vadd.f32 %v1454, %v1448
    %v1456 = vadd.f32 %v1455, %v1449
    %v1457 = vadd.f32 %v1456, %v1450
    %v1458 = vadd.f32 %v1457, %v1451
    %v1459 = vrot.slane %v1458, 4
    %v1460 = vadd.f32 %v1458, %v1459
    %v1461 = vrot.slane %v1460, 2
    %v1462 = vadd.f32 %v1460, %v1461
    %v1463 = vrot.slane %v1462, 1
    %v1464 = vadd.f32 %v1462, %v1463
    %v1465 = vld [vmem:[#allocation2] sm:$0x1]
    %1467 = vset.pattern.permute.xlu0 0
    %1468 = vperm.xlu0 %1467, %v1465
    %v1469 = vpop.permute.xlu0 %1468
    %v1471 = vlaneseq
    %v1472 = vshrl.u32 %v1471, 7
    %v1473 = vsub.s32 0, %v1472
    %v1474 = vrot.slane %v1469, %v1473
    %v1475 = vadd.f32 %v1464, %v1474
    %1476 = vst [vmem:[#allocation3] sm:$0x1] %v1475
    // Predicated region
    $region34: #{tpu_custom_call.1} parent=1 // pred_check
      _
    $region35: #{tpu_custom_call.1} parent=1 // pred_check_branch
      %1478 = sbr.rel (0) target = $region37
    $region36: #{tpu_custom_call.1} parent=1 // pred_region
      %s1480 = ssub.s32 16, 16
      %1481 = vsyncadd [#allocation4], %s1480
      %s1483 = sshll.u32 [#allocation3], 4
      %s1484 = int_to_ptr.vmem [resolvable:$true] %s1483
      %1486 = dma.vmem_to_hbm [thread:$0]  %s1484, 16, %s8, [#allocation4]
    $region37: #{tpu_custom_call.1} parent=1 // pred_fallthru
      _
    // Predicated region
    $region38: #{tpu_custom_call.1} parent=1 // pred_check
      _
    $region39: #{tpu_custom_call.1} parent=1 // pred_check_branch
      %1488 = sbr.rel (0) target = $region41
    $region40: #{tpu_custom_call.1} parent=1 // pred_region
      %1489 = dma.done [#allocation4], 16
    $region41: #{tpu_custom_call.1} parent=1 // pred_fallthru
      _
    %1490 = vsyncpa [#allocation4], 1

</llo_original>
